<compile_context>
chip_gen: v5e
topology: v5e:2x2
jax: 0.10.0
libtpu: 0.0.40
codegen_flags: <defaults>
</compile_context>

<pallas_src>
import functools
import math

import jax
import jax.numpy as jnp
import numpy as np
from jax import lax
from jax.experimental import pallas as pl
from jax.experimental.pallas import tpu as pltpu

LN_EPS = 1e-5  # PyTorch nn.LayerNorm default


def _layernorm(x, gamma, beta):
    # x: [N, E]; gamma/beta: [1, E]; biased variance (torch.nn.LayerNorm semantics)
    mean = jnp.mean(x, axis=-1, keepdims=True)
    xc = x - mean
    var = jnp.mean(xc * xc, axis=-1, keepdims=True)
    return xc * lax.rsqrt(var + LN_EPS) * gamma + beta


def _transformer_self_kernel(x_ref, w_in_ref, w_out_ref, vecs_ref, o_ref, *,
                             seq_len, batch, embed_dim, num_heads, compute_dtype):
    """Whole problem resident in VMEM.  Only 2-D matmuls, static slices, row
    reductions — no transposes, no relayout reshapes, no batched dots."""
    L, B, E, H = seq_len, batch, embed_dim, num_heads
    hd = E // H

    vecs = vecs_ref[...].astype(jnp.float32)                 # [8, E] packed vectors
    g1, b1 = vecs[0:1, :], vecs[1:2, :]
    g2, b2 = vecs[2:3, :], vecs[3:4, :]
    b_q, b_k, b_v = vecs[4:5, :], vecs[5:6, :], vecs[6:7, :]  # b_q pre-scaled
    b_out = vecs[7:8, :]

    w_in = w_in_ref[...].astype(compute_dtype)                # [E, 3E], Q block pre-scaled
    w_out = w_out_ref[...].astype(compute_dtype)              # [H, hd, E]

    # B and H are tiny static constants here; for large B/H this becomes a grid
    # dimension (dimension_semantics=("parallel",)) instead of a Python unroll.
    for b in range(B):
        xb = x_ref[:, b, :].astype(jnp.float32)               # [L, E], static slice
        xb = _layernorm(xb, g1, b1)                           # ---- LayerNorm 1 ----

        # ---- packed QKV projection (one MXU matmul per batch element) ----
        qkv = jnp.dot(xb.astype(compute_dtype), w_in,
                      preferred_element_type=jnp.float32)     # [L, 3E]

        y = None
        for h in range(H):
            lo = h * hd
            q = qkv[:, lo:lo + hd] + b_q[:, lo:lo + hd]                 # [L, hd]
            k = qkv[:, E + lo:E + lo + hd] + b_k[:, lo:lo + hd]
            v = qkv[:, 2 * E + lo:2 * E + lo + hd] + b_v[:, lo:lo + hd]

            # scores = q @ k^T via contraction of the minor dims (no transpose)
            s = lax.dot_general(q.astype(compute_dtype), k.astype(compute_dtype),
                                (((1,), (1,)), ((), ())),
                                preferred_element_type=jnp.float32)     # [L, L]
            s = s - jnp.max(s, axis=-1, keepdims=True)
            p = jnp.exp(s)
            denom = jnp.sum(p, axis=-1, keepdims=True)
            r = pl.reciprocal(denom, approx=True)              # EUP slot (nearly free)
            r = r * (2.0 - denom * r)                          # Newton step -> ~f32 exact

            ctx = jnp.dot((p * r).astype(compute_dtype), v.astype(compute_dtype),
                          preferred_element_type=jnp.float32)  # [L, hd]

            # ---- head re-pack folded into the output projection ----
            contrib = jnp.dot(ctx.astype(compute_dtype), w_out[h],
                              preferred_element_type=jnp.float32)       # [L, E]
            y = contrib if y is None else y + contrib

        # TODO(synk): nn.Dropout(0.4) training-mode masking not implemented;
        # identity (eval-mode semantics).
        y = _layernorm(y + b_out, g2, b2)                      # ---- LayerNorm 2 ----
        o_ref[:, b, :] = y.astype(o_ref.dtype)                 # static-index store


def prepare_transformer_self_params(params, num_heads):
    """One-time parameter prep (call once at init, NOT per forward)."""
    E = params["w_out"].shape[0]
    assert E % num_heads == 0
    hd = E // num_heads
    scale = 1.0 / math.sqrt(hd)

    w_in, b_in = params["w_in"], params["b_in"]                # [3E, E], [3E]
    # Pre-transpose to [E, 3E] and fold the 1/sqrt(hd) query scale into W_q / b_q.
    w_in_t = jnp.concatenate(
        [w_in[:E] * scale, w_in[E:2 * E], w_in[2 * E:]], axis=0).T      # [E, 3E]
    # Out-proj weight pre-transposed and pre-split per head: [H, hd, E].
    w_out3 = params["w_out"].T.reshape(num_heads, hd, E)
    # Pack the 8 per-channel vectors into one [8, E] operand.
    vecs = jnp.stack([params["g1"], params["b1"], params["g2"], params["b2"],
                      b_in[:E] * scale, b_in[E:2 * E], b_in[2 * E:],
                      params["b_out"]], axis=0)                          # [8, E]
    return {"w_in_t": w_in_t, "w_out3": w_out3, "vecs": vecs}


@functools.partial(jax.jit, static_argnames=("num_heads", "compute_dtype"))
def transformer_self_forward(video_embeds, prepped, num_heads,
                             compute_dtype=jnp.float32):
    """video_embeds: [L, B, E] seq-first, like nn.MultiheadAttention(batch_first=False).
    `prepped` comes from prepare_transformer_self_params (one-time)."""
    L, B, E = video_embeds.shape
    assert E % num_heads == 0
    hd = E // num_heads

    flops = (2 * (L * B) * E * (3 * E)                  # in_proj
             + 2 * 2 * (B * num_heads) * L * L * hd     # scores + context
             + 2 * (L * B) * E * E)                     # out_proj (per-head folded)
    bytes_accessed = 4 * (2 * L * B * E + E * 3 * E + num_heads * hd * E + 8 * E)

    vmem = pl.BlockSpec(memory_space=pltpu.MemorySpace.VMEM)
    return pl.pallas_call(
        functools.partial(
            _transformer_self_kernel, seq_len=L, batch=B, embed_dim=E,
            num_heads=num_heads, compute_dtype=compute_dtype),
        out_shape=jax.ShapeDtypeStruct((L, B, E), video_embeds.dtype),
        in_specs=[vmem, vmem, vmem, vmem],
        out_specs=vmem,
        cost_estimate=pl.CostEstimate(flops=flops,
                                      transcendentals=B * num_heads * L * L,
                                      bytes_accessed=bytes_accessed),
    )(video_embeds, prepped["w_in_t"], prepped["w_out3"], prepped["vecs"])


# ---------------- pure-JAX reference (same math, for verification) ----------------
def reference_forward(video_embeds, params, num_heads):
    x = video_embeds.astype(jnp.float32)                  # [L, B, E]
    L, B, E = x.shape
    hd = E // num_heads
    scale = 1.0 / math.sqrt(hd)

    def ln(z, g, b):
        m = jnp.mean(z, axis=-1, keepdims=True)
        zc = z - m
        v = jnp.mean(zc * zc, axis=-1, keepdims=True)
        return zc * lax.rsqrt(v + LN_EPS) * g + b

    x_ln = ln(x, params["g1"], params["b1"])
    qkv = jnp.einsum("lbe,fe->lbf", x_ln, params["w_in"]) + params["b_in"]
    q, k, v = qkv[..., :E], qkv[..., E:2 * E], qkv[..., 2 * E:]
    q = (q * scale).reshape(L, B, num_heads, hd)
    k = k.reshape(L, B, num_heads, hd)
    v = v.reshape(L, B, num_heads, hd)
    s = jnp.einsum("lbhd,mbhd->bhlm", q, k)
    p = jax.nn.softmax(s, axis=-1)
    o = jnp.einsum("bhlm,mbhd->lbhd", p, v).reshape(L, B, E)
    o = jnp.einsum("lbe,fe->lbf", o, params["w_out"]) + params["b_out"]
    return ln(o, params["g2"], params["b2"])


if __name__ == "__main__":
    # L = num_vids (the attention axis), B = num_frames (independent batch axis)
    L, B, E, H = 8, 2, 32, 4
    key = jax.random.PRNGKey(0)
    ks = jax.random.split(key, 9)
    params = {
        "w_in":  0.1 * jax.random.normal(ks[0], (3 * E, E), jnp.float32),
        "b_in":  0.1 * jax.random.normal(ks[1], (3 * E,), jnp.float32),
        "w_out": 0.1 * jax.random.normal(ks[2], (E, E), jnp.float32),
        "b_out": 0.1 * jax.random.normal(ks[3], (E,), jnp.float32),
        "g1": 1.0 + 0.1 * jax.random.normal(ks[4], (E,), jnp.float32),
        "b1": 0.1 * jax.random.normal(ks[5], (E,), jnp.float32),
        "g2": 1.0 + 0.1 * jax.random.normal(ks[6], (E,), jnp.float32),
        "b2": 0.1 * jax.random.normal(ks[7], (E,), jnp.float32),
    }
    video_embeds = jax.random.normal(ks[8], (L, B, E), jnp.float32)

    # One-time prep (hoisted out of the per-call path per the performance review).
    prepped = prepare_transformer_self_params(params, num_heads=H)
    prepped = jax.tree_util.tree_map(jax.block_until_ready, prepped)

    out = transformer_self_forward(video_embeds, prepped, num_heads=H,
                                   compute_dtype=jnp.float32)
    out = jax.block_until_ready(out)
    assert out.shape == (L, B, E)

    ref = reference_forward(video_embeds, params, H)
    # Tolerance slightly looser than pure-f32 round-off because the softmax
    # denominator uses the EUP approx reciprocal (refined by one Newton step).
    np.testing.assert_allclose(np.asarray(out), np.asarray(ref), rtol=1e-3, atol=1e-3)
    print("KERNEL_OK")
</pallas_src>

<mosaic_0001>
module attributes {stable_mosaic.version = 11 : i64} {
  func.func @_transformer_self_kernel(%arg0: memref<8x2x32xf32, #tpu.memory_space<vmem>>, %arg1: memref<32x96xf32, #tpu.memory_space<vmem>>, %arg2: memref<4x8x32xf32, #tpu.memory_space<vmem>>, %arg3: memref<8x32xf32, #tpu.memory_space<vmem>>, %arg4: memref<8x2x32xf32, #tpu.memory_space<vmem>>) attributes {dimension_semantics = [], scalar_prefetch = 0 : i64, scratch_operands = 0 : i64, tpu.core_type = #tpu.core_type<tc>} {
    %c0 = arith.constant 0 : index
    %c0_0 = arith.constant 0 : index
    %0 = vector.load %arg3[%c0, %c0_0] : memref<8x32xf32, #tpu.memory_space<vmem>>, vector<8x32xf32>
    %1 = vector.extract_strided_slice %0 {offsets = [0, 0], sizes = [1, 32], strides = [1, 1]} : vector<8x32xf32> to vector<1x32xf32>
    %2 = vector.extract_strided_slice %0 {offsets = [1, 0], sizes = [1, 32], strides = [1, 1]} : vector<8x32xf32> to vector<1x32xf32>
    %3 = vector.extract_strided_slice %0 {offsets = [2, 0], sizes = [1, 32], strides = [1, 1]} : vector<8x32xf32> to vector<1x32xf32>
    %4 = vector.extract_strided_slice %0 {offsets = [3, 0], sizes = [1, 32], strides = [1, 1]} : vector<8x32xf32> to vector<1x32xf32>
    %5 = vector.extract_strided_slice %0 {offsets = [4, 0], sizes = [1, 32], strides = [1, 1]} : vector<8x32xf32> to vector<1x32xf32>
    %6 = vector.extract_strided_slice %0 {offsets = [5, 0], sizes = [1, 32], strides = [1, 1]} : vector<8x32xf32> to vector<1x32xf32>
    %7 = vector.extract_strided_slice %0 {offsets = [6, 0], sizes = [1, 32], strides = [1, 1]} : vector<8x32xf32> to vector<1x32xf32>
    %8 = vector.extract_strided_slice %0 {offsets = [7, 0], sizes = [1, 32], strides = [1, 1]} : vector<8x32xf32> to vector<1x32xf32>
    %c0_1 = arith.constant 0 : index
    %c0_2 = arith.constant 0 : index
    %9 = vector.load %arg1[%c0_1, %c0_2] : memref<32x96xf32, #tpu.memory_space<vmem>>, vector<32x96xf32>
    %c0_3 = arith.constant 0 : index
    %c0_4 = arith.constant 0 : index
    %c0_5 = arith.constant 0 : index
    %10 = vector.load %arg2[%c0_3, %c0_4, %c0_5] : memref<4x8x32xf32, #tpu.memory_space<vmem>>, vector<4x8x32xf32>
    %c0_6 = arith.constant 0 : index
    %c0_7 = arith.constant 0 : index
    %c0_8 = arith.constant 0 : index
    %11 = vector.load %arg0[%c0_6, %c0_7, %c0_8] : memref<8x2x32xf32, #tpu.memory_space<vmem>>, vector<8x1x32xf32>
    %12 = vector.shape_cast %11 : vector<8x1x32xf32> to vector<8x32xf32>
    %cst = arith.constant dense<0.000000e+00> : vector<8xf32>
    %13 = vector.multi_reduction <add>, %12, %cst [1] : vector<8x32xf32> to vector<8xf32>
    %14 = vector.shape_cast %13 : vector<8xf32> to vector<8x1xf32>
    %cst_9 = arith.constant 3.200000e+01 : f32
    %15 = vector.broadcast %cst_9 : f32 to vector<8x1xf32>
    %16 = arith.divf %14, %15 : vector<8x1xf32>
    %17 = vector.broadcast %16 : vector<8x1xf32> to vector<8x32xf32>
    %18 = arith.subf %12, %17 : vector<8x32xf32>
    %19 = arith.mulf %18, %18 : vector<8x32xf32>
    %cst_10 = arith.constant dense<0.000000e+00> : vector<8xf32>
    %20 = vector.multi_reduction <add>, %19, %cst_10 [1] : vector<8x32xf32> to vector<8xf32>
    %21 = vector.shape_cast %20 : vector<8xf32> to vector<8x1xf32>
    %cst_11 = arith.constant 3.200000e+01 : f32
    %22 = vector.broadcast %cst_11 : f32 to vector<8x1xf32>
    %23 = arith.divf %21, %22 : vector<8x1xf32>
    %cst_12 = arith.constant 9.99999974E-6 : f32
    %24 = vector.broadcast %cst_12 : f32 to vector<8x1xf32>
    %25 = arith.addf %23, %24 : vector<8x1xf32>
    %26 = math.rsqrt %25 : vector<8x1xf32>
    %27 = vector.broadcast %26 : vector<8x1xf32> to vector<8x32xf32>
    %28 = arith.mulf %18, %27 : vector<8x32xf32>
    %29 = vector.broadcast %1 : vector<1x32xf32> to vector<8x32xf32>
    %30 = arith.mulf %28, %29 : vector<8x32xf32>
    %31 = vector.broadcast %2 : vector<1x32xf32> to vector<8x32xf32>
    %32 = arith.addf %30, %31 : vector<8x32xf32>
    %cst_13 = arith.constant dense<0.000000e+00> : vector<8x96xf32>
    %33 = tpu.matmul %32, %9, %cst_13 {dimension_numbers = #tpu.dot_dimension_numbers<[1], [0], [0], [1], [0, 0, 1, 1], [], []>} : vector<8x32xf32>, vector<32x96xf32>, vector<8x96xf32> -> vector<8x96xf32>
    %34 = vector.extract_strided_slice %33 {offsets = [0, 0], sizes = [8, 8], strides = [1, 1]} : vector<8x96xf32> to vector<8x8xf32>
    %35 = vector.extract_strided_slice %5 {offsets = [0, 0], sizes = [1, 8], strides = [1, 1]} : vector<1x32xf32> to vector<1x8xf32>
    %36 = vector.broadcast %35 : vector<1x8xf32> to vector<8x8xf32>
    %37 = arith.addf %34, %36 : vector<8x8xf32>
    %38 = vector.extract_strided_slice %33 {offsets = [0, 32], sizes = [8, 8], strides = [1, 1]} : vector<8x96xf32> to vector<8x8xf32>
    %39 = vector.extract_strided_slice %6 {offsets = [0, 0], sizes = [1, 8], strides = [1, 1]} : vector<1x32xf32> to vector<1x8xf32>
    %40 = vector.broadcast %39 : vector<1x8xf32> to vector<8x8xf32>
    %41 = arith.addf %38, %40 : vector<8x8xf32>
    %42 = vector.extract_strided_slice %33 {offsets = [0, 64], sizes = [8, 8], strides = [1, 1]} : vector<8x96xf32> to vector<8x8xf32>
    %43 = vector.extract_strided_slice %7 {offsets = [0, 0], sizes = [1, 8], strides = [1, 1]} : vector<1x32xf32> to vector<1x8xf32>
    %44 = vector.broadcast %43 : vector<1x8xf32> to vector<8x8xf32>
    %45 = arith.addf %42, %44 : vector<8x8xf32>
    %cst_14 = arith.constant dense<0.000000e+00> : vector<8x8xf32>
    %46 = tpu.matmul %37, %41, %cst_14 {dimension_numbers = #tpu.dot_dimension_numbers<[1], [1], [0], [0], [0, 0, 1, 0], [], []>} : vector<8x8xf32>, vector<8x8xf32>, vector<8x8xf32> -> vector<8x8xf32>
    %cst_15 = arith.constant dense<0xFF800000> : vector<8xf32>
    %47 = vector.multi_reduction <maximumf>, %46, %cst_15 [1] : vector<8x8xf32> to vector<8xf32>
    %48 = vector.shape_cast %47 : vector<8xf32> to vector<8x1xf32>
    %49 = vector.broadcast %48 : vector<8x1xf32> to vector<8x8xf32>
    %50 = arith.subf %46, %49 : vector<8x8xf32>
    %51 = math.exp %50 : vector<8x8xf32>
    %cst_16 = arith.constant dense<0.000000e+00> : vector<8xf32>
    %52 = vector.multi_reduction <add>, %51, %cst_16 [1] : vector<8x8xf32> to vector<8xf32>
    %53 = vector.shape_cast %52 : vector<8xf32> to vector<8x1xf32>
    %54 = tpu.reciprocal %53 {approx = true} : vector<8x1xf32> -> vector<8x1xf32>
    %55 = arith.mulf %53, %54 : vector<8x1xf32>
    %cst_17 = arith.constant 2.000000e+00 : f32
    %56 = vector.broadcast %cst_17 : f32 to vector<8x1xf32>
    %57 = arith.subf %56, %55 : vector<8x1xf32>
    %58 = arith.mulf %54, %57 : vector<8x1xf32>
    %59 = vector.broadcast %58 : vector<8x1xf32> to vector<8x8xf32>
    %60 = arith.mulf %51, %59 : vector<8x8xf32>
    %cst_18 = arith.constant dense<0.000000e+00> : vector<8x8xf32>
    %61 = tpu.matmul %60, %45, %cst_18 {dimension_numbers = #tpu.dot_dimension_numbers<[1], [0], [0], [1], [0, 0, 1, 1], [], []>} : vector<8x8xf32>, vector<8x8xf32>, vector<8x8xf32> -> vector<8x8xf32>
    %62 = vector.extract_strided_slice %10 {offsets = [0, 0, 0], sizes = [1, 8, 32], strides = [1, 1, 1]} : vector<4x8x32xf32> to vector<1x8x32xf32>
    %63 = vector.shape_cast %62 : vector<1x8x32xf32> to vector<8x32xf32>
    %cst_19 = arith.constant dense<0.000000e+00> : vector<8x32xf32>
    %64 = tpu.matmul %61, %63, %cst_19 {dimension_numbers = #tpu.dot_dimension_numbers<[1], [0], [0], [1], [0, 0, 1, 1], [], []>} : vector<8x8xf32>, vector<8x32xf32>, vector<8x32xf32> -> vector<8x32xf32>
    %65 = vector.extract_strided_slice %33 {offsets = [0, 8], sizes = [8, 8], strides = [1, 1]} : vector<8x96xf32> to vector<8x8xf32>
    %66 = vector.extract_strided_slice %5 {offsets = [0, 8], sizes = [1, 8], strides = [1, 1]} : vector<1x32xf32> to vector<1x8xf32>
    %67 = vector.broadcast %66 : vector<1x8xf32> to vector<8x8xf32>
    %68 = arith.addf %65, %67 : vector<8x8xf32>
    %69 = vector.extract_strided_slice %33 {offsets = [0, 40], sizes = [8, 8], strides = [1, 1]} : vector<8x96xf32> to vector<8x8xf32>
    %70 = vector.extract_strided_slice %6 {offsets = [0, 8], sizes = [1, 8], strides = [1, 1]} : vector<1x32xf32> to vector<1x8xf32>
    %71 = vector.broadcast %70 : vector<1x8xf32> to vector<8x8xf32>
    %72 = arith.addf %69, %71 : vector<8x8xf32>
    %73 = vector.extract_strided_slice %33 {offsets = [0, 72], sizes = [8, 8], strides = [1, 1]} : vector<8x96xf32> to vector<8x8xf32>
    %74 = vector.extract_strided_slice %7 {offsets = [0, 8], sizes = [1, 8], strides = [1, 1]} : vector<1x32xf32> to vector<1x8xf32>
    %75 = vector.broadcast %74 : vector<1x8xf32> to vector<8x8xf32>
    %76 = arith.addf %73, %75 : vector<8x8xf32>
    %cst_20 = arith.constant dense<0.000000e+00> : vector<8x8xf32>
    %77 = tpu.matmul %68, %72, %cst_20 {dimension_numbers = #tpu.dot_dimension_numbers<[1], [1], [0], [0], [0, 0, 1, 0], [], []>} : vector<8x8xf32>, vector<8x8xf32>, vector<8x8xf32> -> vector<8x8xf32>
    %cst_21 = arith.constant dense<0xFF800000> : vector<8xf32>
    %78 = vector.multi_reduction <maximumf>, %77, %cst_21 [1] : vector<8x8xf32> to vector<8xf32>
    %79 = vector.shape_cast %78 : vector<8xf32> to vector<8x1xf32>
    %80 = vector.broadcast %79 : vector<8x1xf32> to vector<8x8xf32>
    %81 = arith.subf %77, %80 : vector<8x8xf32>
    %82 = math.exp %81 : vector<8x8xf32>
    %cst_22 = arith.constant dense<0.000000e+00> : vector<8xf32>
    %83 = vector.multi_reduction <add>, %82, %cst_22 [1] : vector<8x8xf32> to vector<8xf32>
    %84 = vector.shape_cast %83 : vector<8xf32> to vector<8x1xf32>
    %85 = tpu.reciprocal %84 {approx = true} : vector<8x1xf32> -> vector<8x1xf32>
    %86 = arith.mulf %84, %85 : vector<8x1xf32>
    %cst_23 = arith.constant 2.000000e+00 : f32
    %87 = vector.broadcast %cst_23 : f32 to vector<8x1xf32>
    %88 = arith.subf %87, %86 : vector<8x1xf32>
    %89 = arith.mulf %85, %88 : vector<8x1xf32>
    %90 = vector.broadcast %89 : vector<8x1xf32> to vector<8x8xf32>
    %91 = arith.mulf %82, %90 : vector<8x8xf32>
    %cst_24 = arith.constant dense<0.000000e+00> : vector<8x8xf32>
    %92 = tpu.matmul %91, %76, %cst_24 {dimension_numbers = #tpu.dot_dimension_numbers<[1], [0], [0], [1], [0, 0, 1, 1], [], []>} : vector<8x8xf32>, vector<8x8xf32>, vector<8x8xf32> -> vector<8x8xf32>
    %93 = vector.extract_strided_slice %10 {offsets = [1, 0, 0], sizes = [1, 8, 32], strides = [1, 1, 1]} : vector<4x8x32xf32> to vector<1x8x32xf32>
    %94 = vector.shape_cast %93 : vector<1x8x32xf32> to vector<8x32xf32>
    %cst_25 = arith.constant dense<0.000000e+00> : vector<8x32xf32>
    %95 = tpu.matmul %92, %94, %cst_25 {dimension_numbers = #tpu.dot_dimension_numbers<[1], [0], [0], [1], [0, 0, 1, 1], [], []>} : vector<8x8xf32>, vector<8x32xf32>, vector<8x32xf32> -> vector<8x32xf32>
    %96 = arith.addf %64, %95 : vector<8x32xf32>
    %97 = vector.extract_strided_slice %33 {offsets = [0, 16], sizes = [8, 8], strides = [1, 1]} : vector<8x96xf32> to vector<8x8xf32>
    %98 = vector.extract_strided_slice %5 {offsets = [0, 16], sizes = [1, 8], strides = [1, 1]} : vector<1x32xf32> to vector<1x8xf32>
    %99 = vector.broadcast %98 : vector<1x8xf32> to vector<8x8xf32>
    %100 = arith.addf %97, %99 : vector<8x8xf32>
    %101 = vector.extract_strided_slice %33 {offsets = [0, 48], sizes = [8, 8], strides = [1, 1]} : vector<8x96xf32> to vector<8x8xf32>
    %102 = vector.extract_strided_slice %6 {offsets = [0, 16], sizes = [1, 8], strides = [1, 1]} : vector<1x32xf32> to vector<1x8xf32>
    %103 = vector.broadcast %102 : vector<1x8xf32> to vector<8x8xf32>
    %104 = arith.addf %101, %103 : vector<8x8xf32>
    %105 = vector.extract_strided_slice %33 {offsets = [0, 80], sizes = [8, 8], strides = [1, 1]} : vector<8x96xf32> to vector<8x8xf32>
    %106 = vector.extract_strided_slice %7 {offsets = [0, 16], sizes = [1, 8], strides = [1, 1]} : vector<1x32xf32> to vector<1x8xf32>
    %107 = vector.broadcast %106 : vector<1x8xf32> to vector<8x8xf32>
    %108 = arith.addf %105, %107 : vector<8x8xf32>
    %cst_26 = arith.constant dense<0.000000e+00> : vector<8x8xf32>
    %109 = tpu.matmul %100, %104, %cst_26 {dimension_numbers = #tpu.dot_dimension_numbers<[1], [1], [0], [0], [0, 0, 1, 0], [], []>} : vector<8x8xf32>, vector<8x8xf32>, vector<8x8xf32> -> vector<8x8xf32>
    %cst_27 = arith.constant dense<0xFF800000> : vector<8xf32>
    %110 = vector.multi_reduction <maximumf>, %109, %cst_27 [1] : vector<8x8xf32> to vector<8xf32>
    %111 = vector.shape_cast %110 : vector<8xf32> to vector<8x1xf32>
    %112 = vector.broadcast %111 : vector<8x1xf32> to vector<8x8xf32>
    %113 = arith.subf %109, %112 : vector<8x8xf32>
    %114 = math.exp %113 : vector<8x8xf32>
    %cst_28 = arith.constant dense<0.000000e+00> : vector<8xf32>
    %115 = vector.multi_reduction <add>, %114, %cst_28 [1] : vector<8x8xf32> to vector<8xf32>
    %116 = vector.shape_cast %115 : vector<8xf32> to vector<8x1xf32>
    %117 = tpu.reciprocal %116 {approx = true} : vector<8x1xf32> -> vector<8x1xf32>
    %118 = arith.mulf %116, %117 : vector<8x1xf32>
    %cst_29 = arith.constant 2.000000e+00 : f32
    %119 = vector.broadcast %cst_29 : f32 to vector<8x1xf32>
    %120 = arith.subf %119, %118 : vector<8x1xf32>
    %121 = arith.mulf %117, %120 : vector<8x1xf32>
    %122 = vector.broadcast %121 : vector<8x1xf32> to vector<8x8xf32>
    %123 = arith.mulf %114, %122 : vector<8x8xf32>
    %cst_30 = arith.constant dense<0.000000e+00> : vector<8x8xf32>
    %124 = tpu.matmul %123, %108, %cst_30 {dimension_numbers = #tpu.dot_dimension_numbers<[1], [0], [0], [1], [0, 0, 1, 1], [], []>} : vector<8x8xf32>, vector<8x8xf32>, vector<8x8xf32> -> vector<8x8xf32>
    %125 = vector.extract_strided_slice %10 {offsets = [2, 0, 0], sizes = [1, 8, 32], strides = [1, 1, 1]} : vector<4x8x32xf32> to vector<1x8x32xf32>
    %126 = vector.shape_cast %125 : vector<1x8x32xf32> to vector<8x32xf32>
    %cst_31 = arith.constant dense<0.000000e+00> : vector<8x32xf32>
    %127 = tpu.matmul %124, %126, %cst_31 {dimension_numbers = #tpu.dot_dimension_numbers<[1], [0], [0], [1], [0, 0, 1, 1], [], []>} : vector<8x8xf32>, vector<8x32xf32>, vector<8x32xf32> -> vector<8x32xf32>
    %128 = arith.addf %96, %127 : vector<8x32xf32>
    %129 = vector.extract_strided_slice %33 {offsets = [0, 24], sizes = [8, 8], strides = [1, 1]} : vector<8x96xf32> to vector<8x8xf32>
    %130 = vector.extract_strided_slice %5 {offsets = [0, 24], sizes = [1, 8], strides = [1, 1]} : vector<1x32xf32> to vector<1x8xf32>
    %131 = vector.broadcast %130 : vector<1x8xf32> to vector<8x8xf32>
    %132 = arith.addf %129, %131 : vector<8x8xf32>
    %133 = vector.extract_strided_slice %33 {offsets = [0, 56], sizes = [8, 8], strides = [1, 1]} : vector<8x96xf32> to vector<8x8xf32>
    %134 = vector.extract_strided_slice %6 {offsets = [0, 24], sizes = [1, 8], strides = [1, 1]} : vector<1x32xf32> to vector<1x8xf32>
    %135 = vector.broadcast %134 : vector<1x8xf32> to vector<8x8xf32>
    %136 = arith.addf %133, %135 : vector<8x8xf32>
    %137 = vector.extract_strided_slice %33 {offsets = [0, 88], sizes = [8, 8], strides = [1, 1]} : vector<8x96xf32> to vector<8x8xf32>
    %138 = vector.extract_strided_slice %7 {offsets = [0, 24], sizes = [1, 8], strides = [1, 1]} : vector<1x32xf32> to vector<1x8xf32>
    %139 = vector.broadcast %138 : vector<1x8xf32> to vector<8x8xf32>
    %140 = arith.addf %137, %139 : vector<8x8xf32>
    %cst_32 = arith.constant dense<0.000000e+00> : vector<8x8xf32>
    %141 = tpu.matmul %132, %136, %cst_32 {dimension_numbers = #tpu.dot_dimension_numbers<[1], [1], [0], [0], [0, 0, 1, 0], [], []>} : vector<8x8xf32>, vector<8x8xf32>, vector<8x8xf32> -> vector<8x8xf32>
    %cst_33 = arith.constant dense<0xFF800000> : vector<8xf32>
    %142 = vector.multi_reduction <maximumf>, %141, %cst_33 [1] : vector<8x8xf32> to vector<8xf32>
    %143 = vector.shape_cast %142 : vector<8xf32> to vector<8x1xf32>
    %144 = vector.broadcast %143 : vector<8x1xf32> to vector<8x8xf32>
    %145 = arith.subf %141, %144 : vector<8x8xf32>
    %146 = math.exp %145 : vector<8x8xf32>
    %cst_34 = arith.constant dense<0.000000e+00> : vector<8xf32>
    %147 = vector.multi_reduction <add>, %146, %cst_34 [1] : vector<8x8xf32> to vector<8xf32>
    %148 = vector.shape_cast %147 : vector<8xf32> to vector<8x1xf32>
    %149 = tpu.reciprocal %148 {approx = true} : vector<8x1xf32> -> vector<8x1xf32>
    %150 = arith.mulf %148, %149 : vector<8x1xf32>
    %cst_35 = arith.constant 2.000000e+00 : f32
    %151 = vector.broadcast %cst_35 : f32 to vector<8x1xf32>
    %152 = arith.subf %151, %150 : vector<8x1xf32>
    %153 = arith.mulf %149, %152 : vector<8x1xf32>
    %154 = vector.broadcast %153 : vector<8x1xf32> to vector<8x8xf32>
    %155 = arith.mulf %146, %154 : vector<8x8xf32>
    %cst_36 = arith.constant dense<0.000000e+00> : vector<8x8xf32>
    %156 = tpu.matmul %155, %140, %cst_36 {dimension_numbers = #tpu.dot_dimension_numbers<[1], [0], [0], [1], [0, 0, 1, 1], [], []>} : vector<8x8xf32>, vector<8x8xf32>, vector<8x8xf32> -> vector<8x8xf32>
    %157 = vector.extract_strided_slice %10 {offsets = [3, 0, 0], sizes = [1, 8, 32], strides = [1, 1, 1]} : vector<4x8x32xf32> to vector<1x8x32xf32>
    %158 = vector.shape_cast %157 : vector<1x8x32xf32> to vector<8x32xf32>
    %cst_37 = arith.constant dense<0.000000e+00> : vector<8x32xf32>
    %159 = tpu.matmul %156, %158, %cst_37 {dimension_numbers = #tpu.dot_dimension_numbers<[1], [0], [0], [1], [0, 0, 1, 1], [], []>} : vector<8x8xf32>, vector<8x32xf32>, vector<8x32xf32> -> vector<8x32xf32>
    %160 = arith.addf %128, %159 : vector<8x32xf32>
    %161 = vector.broadcast %8 : vector<1x32xf32> to vector<8x32xf32>
    %162 = arith.addf %160, %161 : vector<8x32xf32>
    %cst_38 = arith.constant dense<0.000000e+00> : vector<8xf32>
    %163 = vector.multi_reduction <add>, %162, %cst_38 [1] : vector<8x32xf32> to vector<8xf32>
    %164 = vector.shape_cast %163 : vector<8xf32> to vector<8x1xf32>
    %cst_39 = arith.constant 3.200000e+01 : f32
    %165 = vector.broadcast %cst_39 : f32 to vector<8x1xf32>
    %166 = arith.divf %164, %165 : vector<8x1xf32>
    %167 = vector.broadcast %166 : vector<8x1xf32> to vector<8x32xf32>
    %168 = arith.subf %162, %167 : vector<8x32xf32>
    %169 = arith.mulf %168, %168 : vector<8x32xf32>
    %cst_40 = arith.constant dense<0.000000e+00> : vector<8xf32>
    %170 = vector.multi_reduction <add>, %169, %cst_40 [1] : vector<8x32xf32> to vector<8xf32>
    %171 = vector.shape_cast %170 : vector<8xf32> to vector<8x1xf32>
    %cst_41 = arith.constant 3.200000e+01 : f32
    %172 = vector.broadcast %cst_41 : f32 to vector<8x1xf32>
    %173 = arith.divf %171, %172 : vector<8x1xf32>
    %cst_42 = arith.constant 9.99999974E-6 : f32
    %174 = vector.broadcast %cst_42 : f32 to vector<8x1xf32>
    %175 = arith.addf %173, %174 : vector<8x1xf32>
    %176 = math.rsqrt %175 : vector<8x1xf32>
    %177 = vector.broadcast %176 : vector<8x1xf32> to vector<8x32xf32>
    %178 = arith.mulf %168, %177 : vector<8x32xf32>
    %179 = vector.broadcast %3 : vector<1x32xf32> to vector<8x32xf32>
    %180 = arith.mulf %178, %179 : vector<8x32xf32>
    %181 = vector.broadcast %4 : vector<1x32xf32> to vector<8x32xf32>
    %182 = arith.addf %180, %181 : vector<8x32xf32>
    %c0_43 = arith.constant 0 : index
    %c0_44 = arith.constant 0 : index
    %c0_45 = arith.constant 0 : index
    %183 = vector.load %arg4[%c0_43, %c0_44, %c0_45] : memref<8x2x32xf32, #tpu.memory_space<vmem>>, vector<8x1x32xf32>
    %184 = vector.shape_cast %183 : vector<8x1x32xf32> to vector<8x32xf32>
    %185 = vector.shape_cast %182 : vector<8x32xf32> to vector<8x1x32xf32>
    tpu.vector_store %arg4[%c0_43, %c0_44, %c0_45], %185 {strides = array<i32>} : memref<8x2x32xf32, #tpu.memory_space<vmem>>, vector<8x1x32xf32>,
    %c0_46 = arith.constant 0 : index
    %c1 = arith.constant 1 : index
    %c0_47 = arith.constant 0 : index
    %186 = vector.load %arg0[%c0_46, %c1, %c0_47] : memref<8x2x32xf32, #tpu.memory_space<vmem>>, vector<8x1x32xf32>
    %187 = vector.shape_cast %186 : vector<8x1x32xf32> to vector<8x32xf32>
    %cst_48 = arith.constant dense<0.000000e+00> : vector<8xf32>
    %188 = vector.multi_reduction <add>, %187, %cst_48 [1] : vector<8x32xf32> to vector<8xf32>
    %189 = vector.shape_cast %188 : vector<8xf32> to vector<8x1xf32>
    %cst_49 = arith.constant 3.200000e+01 : f32
    %190 = vector.broadcast %cst_49 : f32 to vector<8x1xf32>
    %191 = arith.divf %189, %190 : vector<8x1xf32>
    %192 = vector.broadcast %191 : vector<8x1xf32> to vector<8x32xf32>
    %193 = arith.subf %187, %192 : vector<8x32xf32>
    %194 = arith.mulf %193, %193 : vector<8x32xf32>
    %cst_50 = arith.constant dense<0.000000e+00> : vector<8xf32>
    %195 = vector.multi_reduction <add>, %194, %cst_50 [1] : vector<8x32xf32> to vector<8xf32>
    %196 = vector.shape_cast %195 : vector<8xf32> to vector<8x1xf32>
    %cst_51 = arith.constant 3.200000e+01 : f32
    %197 = vector.broadcast %cst_51 : f32 to vector<8x1xf32>
    %198 = arith.divf %196, %197 : vector<8x1xf32>
    %cst_52 = arith.constant 9.99999974E-6 : f32
    %199 = vector.broadcast %cst_52 : f32 to vector<8x1xf32>
    %200 = arith.addf %198, %199 : vector<8x1xf32>
    %201 = math.rsqrt %200 : vector<8x1xf32>
    %202 = vector.broadcast %201 : vector<8x1xf32> to vector<8x32xf32>
    %203 = arith.mulf %193, %202 : vector<8x32xf32>
    %204 = vector.broadcast %1 : vector<1x32xf32> to vector<8x32xf32>
    %205 = arith.mulf %203, %204 : vector<8x32xf32>
    %206 = vector.broadcast %2 : vector<1x32xf32> to vector<8x32xf32>
    %207 = arith.addf %205, %206 : vector<8x32xf32>
    %cst_53 = arith.constant dense<0.000000e+00> : vector<8x96xf32>
    %208 = tpu.matmul %207, %9, %cst_53 {dimension_numbers = #tpu.dot_dimension_numbers<[1], [0], [0], [1], [0, 0, 1, 1], [], []>} : vector<8x32xf32>, vector<32x96xf32>, vector<8x96xf32> -> vector<8x96xf32>
    %209 = vector.extract_strided_slice %208 {offsets = [0, 0], sizes = [8, 8], strides = [1, 1]} : vector<8x96xf32> to vector<8x8xf32>
    %210 = vector.extract_strided_slice %5 {offsets = [0, 0], sizes = [1, 8], strides = [1, 1]} : vector<1x32xf32> to vector<1x8xf32>
    %211 = vector.broadcast %210 : vector<1x8xf32> to vector<8x8xf32>
    %212 = arith.addf %209, %211 : vector<8x8xf32>
    %213 = vector.extract_strided_slice %208 {offsets = [0, 32], sizes = [8, 8], strides = [1, 1]} : vector<8x96xf32> to vector<8x8xf32>
    %214 = vector.extract_strided_slice %6 {offsets = [0, 0], sizes = [1, 8], strides = [1, 1]} : vector<1x32xf32> to vector<1x8xf32>
    %215 = vector.broadcast %214 : vector<1x8xf32> to vector<8x8xf32>
    %216 = arith.addf %213, %215 : vector<8x8xf32>
    %217 = vector.extract_strided_slice %208 {offsets = [0, 64], sizes = [8, 8], strides = [1, 1]} : vector<8x96xf32> to vector<8x8xf32>
    %218 = vector.extract_strided_slice %7 {offsets = [0, 0], sizes = [1, 8], strides = [1, 1]} : vector<1x32xf32> to vector<1x8xf32>
    %219 = vector.broadcast %218 : vector<1x8xf32> to vector<8x8xf32>
    %220 = arith.addf %217, %219 : vector<8x8xf32>
    %cst_54 = arith.constant dense<0.000000e+00> : vector<8x8xf32>
    %221 = tpu.matmul %212, %216, %cst_54 {dimension_numbers = #tpu.dot_dimension_numbers<[1], [1], [0], [0], [0, 0, 1, 0], [], []>} : vector<8x8xf32>, vector<8x8xf32>, vector<8x8xf32> -> vector<8x8xf32>
    %cst_55 = arith.constant dense<0xFF800000> : vector<8xf32>
    %222 = vector.multi_reduction <maximumf>, %221, %cst_55 [1] : vector<8x8xf32> to vector<8xf32>
    %223 = vector.shape_cast %222 : vector<8xf32> to vector<8x1xf32>
    %224 = vector.broadcast %223 : vector<8x1xf32> to vector<8x8xf32>
    %225 = arith.subf %221, %224 : vector<8x8xf32>
    %226 = math.exp %225 : vector<8x8xf32>
    %cst_56 = arith.constant dense<0.000000e+00> : vector<8xf32>
    %227 = vector.multi_reduction <add>, %226, %cst_56 [1] : vector<8x8xf32> to vector<8xf32>
    %228 = vector.shape_cast %227 : vector<8xf32> to vector<8x1xf32>
    %229 = tpu.reciprocal %228 {approx = true} : vector<8x1xf32> -> vector<8x1xf32>
    %230 = arith.mulf %228, %229 : vector<8x1xf32>
    %cst_57 = arith.constant 2.000000e+00 : f32
    %231 = vector.broadcast %cst_57 : f32 to vector<8x1xf32>
    %232 = arith.subf %231, %230 : vector<8x1xf32>
    %233 = arith.mulf %229, %232 : vector<8x1xf32>
    %234 = vector.broadcast %233 : vector<8x1xf32> to vector<8x8xf32>
    %235 = arith.mulf %226, %234 : vector<8x8xf32>
    %cst_58 = arith.constant dense<0.000000e+00> : vector<8x8xf32>
    %236 = tpu.matmul %235, %220, %cst_58 {dimension_numbers = #tpu.dot_dimension_numbers<[1], [0], [0], [1], [0, 0, 1, 1], [], []>} : vector<8x8xf32>, vector<8x8xf32>, vector<8x8xf32> -> vector<8x8xf32>
    %237 = vector.extract_strided_slice %10 {offsets = [0, 0, 0], sizes = [1, 8, 32], strides = [1, 1, 1]} : vector<4x8x32xf32> to vector<1x8x32xf32>
    %238 = vector.shape_cast %237 : vector<1x8x32xf32> to vector<8x32xf32>
    %cst_59 = arith.constant dense<0.000000e+00> : vector<8x32xf32>
    %239 = tpu.matmul %236, %238, %cst_59 {dimension_numbers = #tpu.dot_dimension_numbers<[1], [0], [0], [1], [0, 0, 1, 1], [], []>} : vector<8x8xf32>, vector<8x32xf32>, vector<8x32xf32> -> vector<8x32xf32>
    %240 = vector.extract_strided_slice %208 {offsets = [0, 8], sizes = [8, 8], strides = [1, 1]} : vector<8x96xf32> to vector<8x8xf32>
    %241 = vector.extract_strided_slice %5 {offsets = [0, 8], sizes = [1, 8], strides = [1, 1]} : vector<1x32xf32> to vector<1x8xf32>
    %242 = vector.broadcast %241 : vector<1x8xf32> to vector<8x8xf32>
    %243 = arith.addf %240, %242 : vector<8x8xf32>
    %244 = vector.extract_strided_slice %208 {offsets = [0, 40], sizes = [8, 8], strides = [1, 1]} : vector<8x96xf32> to vector<8x8xf32>
    %245 = vector.extract_strided_slice %6 {offsets = [0, 8], sizes = [1, 8], strides = [1, 1]} : vector<1x32xf32> to vector<1x8xf32>
    %246 = vector.broadcast %245 : vector<1x8xf32> to vector<8x8xf32>
    %247 = arith.addf %244, %246 : vector<8x8xf32>
    %248 = vector.extract_strided_slice %208 {offsets = [0, 72], sizes = [8, 8], strides = [1, 1]} : vector<8x96xf32> to vector<8x8xf32>
    %249 = vector.extract_strided_slice %7 {offsets = [0, 8], sizes = [1, 8], strides = [1, 1]} : vector<1x32xf32> to vector<1x8xf32>
    %250 = vector.broadcast %249 : vector<1x8xf32> to vector<8x8xf32>
    %251 = arith.addf %248, %250 : vector<8x8xf32>
    %cst_60 = arith.constant dense<0.000000e+00> : vector<8x8xf32>
    %252 = tpu.matmul %243, %247, %cst_60 {dimension_numbers = #tpu.dot_dimension_numbers<[1], [1], [0], [0], [0, 0, 1, 0], [], []>} : vector<8x8xf32>, vector<8x8xf32>, vector<8x8xf32> -> vector<8x8xf32>
    %cst_61 = arith.constant dense<0xFF800000> : vector<8xf32>
    %253 = vector.multi_reduction <maximumf>, %252, %cst_61 [1] : vector<8x8xf32> to vector<8xf32>
    %254 = vector.shape_cast %253 : vector<8xf32> to vector<8x1xf32>
    %255 = vector.broadcast %254 : vector<8x1xf32> to vector<8x8xf32>
    %256 = arith.subf %252, %255 : vector<8x8xf32>
    %257 = math.exp %256 : vector<8x8xf32>
    %cst_62 = arith.constant dense<0.000000e+00> : vector<8xf32>
    %258 = vector.multi_reduction <add>, %257, %cst_62 [1] : vector<8x8xf32> to vector<8xf32>
    %259 = vector.shape_cast %258 : vector<8xf32> to vector<8x1xf32>
    %260 = tpu.reciprocal %259 {approx = true} : vector<8x1xf32> -> vector<8x1xf32>
    %261 = arith.mulf %259, %260 : vector<8x1xf32>
    %cst_63 = arith.constant 2.000000e+00 : f32
    %262 = vector.broadcast %cst_63 : f32 to vector<8x1xf32>
    %263 = arith.subf %262, %261 : vector<8x1xf32>
    %264 = arith.mulf %260, %263 : vector<8x1xf32>
    %265 = vector.broadcast %264 : vector<8x1xf32> to vector<8x8xf32>
    %266 = arith.mulf %257, %265 : vector<8x8xf32>
    %cst_64 = arith.constant dense<0.000000e+00> : vector<8x8xf32>
    %267 = tpu.matmul %266, %251, %cst_64 {dimension_numbers = #tpu.dot_dimension_numbers<[1], [0], [0], [1], [0, 0, 1, 1], [], []>} : vector<8x8xf32>, vector<8x8xf32>, vector<8x8xf32> -> vector<8x8xf32>
    %268 = vector.extract_strided_slice %10 {offsets = [1, 0, 0], sizes = [1, 8, 32], strides = [1, 1, 1]} : vector<4x8x32xf32> to vector<1x8x32xf32>
    %269 = vector.shape_cast %268 : vector<1x8x32xf32> to vector<8x32xf32>
    %cst_65 = arith.constant dense<0.000000e+00> : vector<8x32xf32>
    %270 = tpu.matmul %267, %269, %cst_65 {dimension_numbers = #tpu.dot_dimension_numbers<[1], [0], [0], [1], [0, 0, 1, 1], [], []>} : vector<8x8xf32>, vector<8x32xf32>, vector<8x32xf32> -> vector<8x32xf32>
    %271 = arith.addf %239, %270 : vector<8x32xf32>
    %272 = vector.extract_strided_slice %208 {offsets = [0, 16], sizes = [8, 8], strides = [1, 1]} : vector<8x96xf32> to vector<8x8xf32>
    %273 = vector.extract_strided_slice %5 {offsets = [0, 16], sizes = [1, 8], strides = [1, 1]} : vector<1x32xf32> to vector<1x8xf32>
    %274 = vector.broadcast %273 : vector<1x8xf32> to vector<8x8xf32>
    %275 = arith.addf %272, %274 : vector<8x8xf32>
    %276 = vector.extract_strided_slice %208 {offsets = [0, 48], sizes = [8, 8], strides = [1, 1]} : vector<8x96xf32> to vector<8x8xf32>
    %277 = vector.extract_strided_slice %6 {offsets = [0, 16], sizes = [1, 8], strides = [1, 1]} : vector<1x32xf32> to vector<1x8xf32>
    %278 = vector.broadcast %277 : vector<1x8xf32> to vector<8x8xf32>
    %279 = arith.addf %276, %278 : vector<8x8xf32>
    %280 = vector.extract_strided_slice %208 {offsets = [0, 80], sizes = [8, 8], strides = [1, 1]} : vector<8x96xf32> to vector<8x8xf32>
    %281 = vector.extract_strided_slice %7 {offsets = [0, 16], sizes = [1, 8], strides = [1, 1]} : vector<1x32xf32> to vector<1x8xf32>
    %282 = vector.broadcast %281 : vector<1x8xf32> to vector<8x8xf32>
    %283 = arith.addf %280, %282 : vector<8x8xf32>
    %cst_66 = arith.constant dense<0.000000e+00> : vector<8x8xf32>
    %284 = tpu.matmul %275, %279, %cst_66 {dimension_numbers = #tpu.dot_dimension_numbers<[1], [1], [0], [0], [0, 0, 1, 0], [], []>} : vector<8x8xf32>, vector<8x8xf32>, vector<8x8xf32> -> vector<8x8xf32>
    %cst_67 = arith.constant dense<0xFF800000> : vector<8xf32>
    %285 = vector.multi_reduction <maximumf>, %284, %cst_67 [1] : vector<8x8xf32> to vector<8xf32>
    %286 = vector.shape_cast %285 : vector<8xf32> to vector<8x1xf32>
    %287 = vector.broadcast %286 : vector<8x1xf32> to vector<8x8xf32>
    %288 = arith.subf %284, %287 : vector<8x8xf32>
    %289 = math.exp %288 : vector<8x8xf32>
    %cst_68 = arith.constant dense<0.000000e+00> : vector<8xf32>
    %290 = vector.multi_reduction <add>, %289, %cst_68 [1] : vector<8x8xf32> to vector<8xf32>
    %291 = vector.shape_cast %290 : vector<8xf32> to vector<8x1xf32>
    %292 = tpu.reciprocal %291 {approx = true} : vector<8x1xf32> -> vector<8x1xf32>
    %293 = arith.mulf %291, %292 : vector<8x1xf32>
    %cst_69 = arith.constant 2.000000e+00 : f32
    %294 = vector.broadcast %cst_69 : f32 to vector<8x1xf32>
    %295 = arith.subf %294, %293 : vector<8x1xf32>
    %296 = arith.mulf %292, %295 : vector<8x1xf32>
    %297 = vector.broadcast %296 : vector<8x1xf32> to vector<8x8xf32>
    %298 = arith.mulf %289, %297 : vector<8x8xf32>
    %cst_70 = arith.constant dense<0.000000e+00> : vector<8x8xf32>
    %299 = tpu.matmul %298, %283, %cst_70 {dimension_numbers = #tpu.dot_dimension_numbers<[1], [0], [0], [1], [0, 0, 1, 1], [], []>} : vector<8x8xf32>, vector<8x8xf32>, vector<8x8xf32> -> vector<8x8xf32>
    %300 = vector.extract_strided_slice %10 {offsets = [2, 0, 0], sizes = [1, 8, 32], strides = [1, 1, 1]} : vector<4x8x32xf32> to vector<1x8x32xf32>
    %301 = vector.shape_cast %300 : vector<1x8x32xf32> to vector<8x32xf32>
    %cst_71 = arith.constant dense<0.000000e+00> : vector<8x32xf32>
    %302 = tpu.matmul %299, %301, %cst_71 {dimension_numbers = #tpu.dot_dimension_numbers<[1], [0], [0], [1], [0, 0, 1, 1], [], []>} : vector<8x8xf32>, vector<8x32xf32>, vector<8x32xf32> -> vector<8x32xf32>
    %303 = arith.addf %271, %302 : vector<8x32xf32>
    %304 = vector.extract_strided_slice %208 {offsets = [0, 24], sizes = [8, 8], strides = [1, 1]} : vector<8x96xf32> to vector<8x8xf32>
    %305 = vector.extract_strided_slice %5 {offsets = [0, 24], sizes = [1, 8], strides = [1, 1]} : vector<1x32xf32> to vector<1x8xf32>
    %306 = vector.broadcast %305 : vector<1x8xf32> to vector<8x8xf32>
    %307 = arith.addf %304, %306 : vector<8x8xf32>
    %308 = vector.extract_strided_slice %208 {offsets = [0, 56], sizes = [8, 8], strides = [1, 1]} : vector<8x96xf32> to vector<8x8xf32>
    %309 = vector.extract_strided_slice %6 {offsets = [0, 24], sizes = [1, 8], strides = [1, 1]} : vector<1x32xf32> to vector<1x8xf32>
    %310 = vector.broadcast %309 : vector<1x8xf32> to vector<8x8xf32>
    %311 = arith.addf %308, %310 : vector<8x8xf32>
    %312 = vector.extract_strided_slice %208 {offsets = [0, 88], sizes = [8, 8], strides = [1, 1]} : vector<8x96xf32> to vector<8x8xf32>
    %313 = vector.extract_strided_slice %7 {offsets = [0, 24], sizes = [1, 8], strides = [1, 1]} : vector<1x32xf32> to vector<1x8xf32>
    %314 = vector.broadcast %313 : vector<1x8xf32> to vector<8x8xf32>
    %315 = arith.addf %312, %314 : vector<8x8xf32>
    %cst_72 = arith.constant dense<0.000000e+00> : vector<8x8xf32>
    %316 = tpu.matmul %307, %311, %cst_72 {dimension_numbers = #tpu.dot_dimension_numbers<[1], [1], [0], [0], [0, 0, 1, 0], [], []>} : vector<8x8xf32>, vector<8x8xf32>, vector<8x8xf32> -> vector<8x8xf32>
    %cst_73 = arith.constant dense<0xFF800000> : vector<8xf32>
    %317 = vector.multi_reduction <maximumf>, %316, %cst_73 [1] : vector<8x8xf32> to vector<8xf32>
    %318 = vector.shape_cast %317 : vector<8xf32> to vector<8x1xf32>
    %319 = vector.broadcast %318 : vector<8x1xf32> to vector<8x8xf32>
    %320 = arith.subf %316, %319 : vector<8x8xf32>
    %321 = math.exp %320 : vector<8x8xf32>
    %cst_74 = arith.constant dense<0.000000e+00> : vector<8xf32>
    %322 = vector.multi_reduction <add>, %321, %cst_74 [1] : vector<8x8xf32> to vector<8xf32>
    %323 = vector.shape_cast %322 : vector<8xf32> to vector<8x1xf32>
    %324 = tpu.reciprocal %323 {approx = true} : vector<8x1xf32> -> vector<8x1xf32>
    %325 = arith.mulf %323, %324 : vector<8x1xf32>
    %cst_75 = arith.constant 2.000000e+00 : f32
    %326 = vector.broadcast %cst_75 : f32 to vector<8x1xf32>
    %327 = arith.subf %326, %325 : vector<8x1xf32>
    %328 = arith.mulf %324, %327 : vector<8x1xf32>
    %329 = vector.broadcast %328 : vector<8x1xf32> to vector<8x8xf32>
    %330 = arith.mulf %321, %329 : vector<8x8xf32>
    %cst_76 = arith.constant dense<0.000000e+00> : vector<8x8xf32>
    %331 = tpu.matmul %330, %315, %cst_76 {dimension_numbers = #tpu.dot_dimension_numbers<[1], [0], [0], [1], [0, 0, 1, 1], [], []>} : vector<8x8xf32>, vector<8x8xf32>, vector<8x8xf32> -> vector<8x8xf32>
    %332 = vector.extract_strided_slice %10 {offsets = [3, 0, 0], sizes = [1, 8, 32], strides = [1, 1, 1]} : vector<4x8x32xf32> to vector<1x8x32xf32>
    %333 = vector.shape_cast %332 : vector<1x8x32xf32> to vector<8x32xf32>
    %cst_77 = arith.constant dense<0.000000e+00> : vector<8x32xf32>
    %334 = tpu.matmul %331, %333, %cst_77 {dimension_numbers = #tpu.dot_dimension_numbers<[1], [0], [0], [1], [0, 0, 1, 1], [], []>} : vector<8x8xf32>, vector<8x32xf32>, vector<8x32xf32> -> vector<8x32xf32>
    %335 = arith.addf %303, %334 : vector<8x32xf32>
    %336 = vector.broadcast %8 : vector<1x32xf32> to vector<8x32xf32>
    %337 = arith.addf %335, %336 : vector<8x32xf32>
    %cst_78 = arith.constant dense<0.000000e+00> : vector<8xf32>
    %338 = vector.multi_reduction <add>, %337, %cst_78 [1] : vector<8x32xf32> to vector<8xf32>
    %339 = vector.shape_cast %338 : vector<8xf32> to vector<8x1xf32>
    %cst_79 = arith.constant 3.200000e+01 : f32
    %340 = vector.broadcast %cst_79 : f32 to vector<8x1xf32>
    %341 = arith.divf %339, %340 : vector<8x1xf32>
    %342 = vector.broadcast %341 : vector<8x1xf32> to vector<8x32xf32>
    %343 = arith.subf %337, %342 : vector<8x32xf32>
    %344 = arith.mulf %343, %343 : vector<8x32xf32>
    %cst_80 = arith.constant dense<0.000000e+00> : vector<8xf32>
    %345 = vector.multi_reduction <add>, %344, %cst_80 [1] : vector<8x32xf32> to vector<8xf32>
    %346 = vector.shape_cast %345 : vector<8xf32> to vector<8x1xf32>
    %cst_81 = arith.constant 3.200000e+01 : f32
    %347 = vector.broadcast %cst_81 : f32 to vector<8x1xf32>
    %348 = arith.divf %346, %347 : vector<8x1xf32>
    %cst_82 = arith.constant 9.99999974E-6 : f32
    %349 = vector.broadcast %cst_82 : f32 to vector<8x1xf32>
    %350 = arith.addf %348, %349 : vector<8x1xf32>
    %351 = math.rsqrt %350 : vector<8x1xf32>
    %352 = vector.broadcast %351 : vector<8x1xf32> to vector<8x32xf32>
    %353 = arith.mulf %343, %352 : vector<8x32xf32>
    %354 = vector.broadcast %3 : vector<1x32xf32> to vector<8x32xf32>
    %355 = arith.mulf %353, %354 : vector<8x32xf32>
    %356 = vector.broadcast %4 : vector<1x32xf32> to vector<8x32xf32>
    %357 = arith.addf %355, %356 : vector<8x32xf32>
    %c0_83 = arith.constant 0 : index
    %c1_84 = arith.constant 1 : index
    %c0_85 = arith.constant 0 : index
    %358 = vector.load %arg4[%c0_83, %c1_84, %c0_85] : memref<8x2x32xf32, #tpu.memory_space<vmem>>, vector<8x1x32xf32>
    %359 = vector.shape_cast %358 : vector<8x1x32xf32> to vector<8x32xf32>
    %360 = vector.shape_cast %357 : vector<8x32xf32> to vector<8x1x32xf32>
    tpu.vector_store %arg4[%c0_83, %c1_84, %c0_85], %360 {strides = array<i32>} : memref<8x2x32xf32, #tpu.memory_space<vmem>>, vector<8x1x32xf32>,
    return
  }
}

</mosaic_0001>

<llo_original>
// kernel: transformer_self_forward.1
$region0: #{transformer_self_forward.1}
  #allocation0 [shape = 'u32[]', space=smem, size = 0x4, offset = 0x4, fixed_abs, tag = 'smem constant byte address 0x4 - core index']
  #allocation1 [shape = 'u32[72,128]{1,0:T(1,128)}', space=vmem, size = 0x9000, scoped, tag = 'internal scratch']
  %s0 = inlined_call_operand.hbm [shape: f32[8,2,32], index: 0, kind: input, shape index: {}]
  %s1 = inlined_call_operand.hbm [shape: f32[32,96], index: 1, kind: input, shape index: {}]
  %s2 = inlined_call_operand.hbm [shape: f32[4,8,32], index: 2, kind: input, shape index: {}]
  %s3 = inlined_call_operand.hbm [shape: f32[8,32], index: 3, kind: input, shape index: {}]
  %s4 = inlined_call_operand.hbm [shape: f32[8,2,32], index: 4, kind: output, shape index: {}]
  %s5 = sld [smem:[#allocation0]]
  $region42: #{transformer_self_forward.1} parent=0
    _
  %s7 = ssub.s32 1, %s5
  %s8 = scalar_select 0, %s7, %s5
  $region1: #{transformer_self_forward.1} parent=0
    #allocation2 [shape = 'u8[8192]{0}', space=vmem, size = 0x2000, scoped, tag = 'input window, operand 0, single buffered']
    #allocation3 [shape = 's32[1]{0}', space=sflag, size = 0x4, scoped, tag = 'scoped memory for transformer_self_forward.1']
    #allocation4 [shape = 's32[1]{0}', space=sflag, size = 0x4, scoped, tag = 'scoped memory for transformer_self_forward.1']
    #allocation5 [shape = 'u8[16384]{0}', space=vmem, size = 0x4000, scoped, tag = 'input window, operand 1, single buffered']
    #allocation6 [shape = 's32[1]{0}', space=sflag, size = 0x4, scoped, tag = 'scoped memory for transformer_self_forward.1']
    #allocation7 [shape = 'u8[16384]{0}', space=vmem, size = 0x4000, scoped, tag = 'input window, operand 2, single buffered']
    #allocation8 [shape = 'u8[4096]{0}', space=vmem, size = 0x1000, scoped, tag = 'input window, operand 3, single buffered']
    #allocation9 [shape = 's32[1]{0}', space=sflag, size = 0x4, scoped, tag = 'scoped memory for transformer_self_forward.1']
    #allocation10 [shape = 'u8[8192]{0}', space=vmem, size = 0x2000, scoped, tag = 'output window, operand 0, single buffered']
    %9 = vsyncpa [#allocation3], 0
    %10 = vsyncpa [#allocation6], 0
    %11 = vsyncpa [#allocation9], 0
    %12 = vsyncpa [#allocation4], 0
    // Predicated region
    $region2: #{transformer_self_forward.1} parent=1 // pred_check
      _
    $region3: #{transformer_self_forward.1} parent=1 // pred_check_branch
      %14 = sbr.rel (0) target = $region5
    $region4: #{transformer_self_forward.1} parent=1 // pred_region
      %16 = vsyncadd [#allocation3], 0
      %s17 = sshll.u32 %s0, 4
      %s18 = int_to_ptr.hbm [resolvable:$true] %s17
      %s19 = sshll.u32 [#allocation2], 4
      %s20 = int_to_ptr.vmem [resolvable:$true] %s19
      %25 = dma.hbm_to_vmem [thread:$0]  %s18, 256, %s20, [#allocation3], 32, 32, 2
    $region5: #{transformer_self_forward.1} parent=1 // pred_fallthru
      _
    // Predicated region
    $region6: #{transformer_self_forward.1} parent=1 // pred_check
      _
    $region7: #{transformer_self_forward.1} parent=1 // pred_check_branch
      %27 = sbr.rel (0) target = $region9
    $region8: #{transformer_self_forward.1} parent=1 // pred_region
      %29 = vsyncadd [#allocation6], 0
      %s30 = sshll.u32 %s1, 4
      %s31 = int_to_ptr.hbm [resolvable:$true] %s30
      %s32 = sshll.u32 [#allocation5], 4
      %s33 = int_to_ptr.vmem [resolvable:$true] %s32
      %38 = dma.hbm_to_vmem [thread:$0]  %s31, 512, %s33, [#allocation6], 128, 128, 8
    $region9: #{transformer_self_forward.1} parent=1 // pred_fallthru
      _
    // Predicated region
    $region10: #{transformer_self_forward.1} parent=1 // pred_check
      _
    $region11: #{transformer_self_forward.1} parent=1 // pred_check_branch
      %40 = sbr.rel (0) target = $region13
    $region12: #{transformer_self_forward.1} parent=1 // pred_region
      %42 = vsyncadd [#allocation6], 0
      %s43 = sshll.u32 %s2, 4
      %s44 = int_to_ptr.hbm [resolvable:$true] %s43
      %s45 = sshll.u32 [#allocation7], 4
      %s46 = int_to_ptr.vmem [resolvable:$true] %s45
      %51 = dma.hbm_to_vmem [thread:$0]  %s44, 512, %s46, [#allocation6], 128, 128, 8
    $region13: #{transformer_self_forward.1} parent=1 // pred_fallthru
      _
    // Predicated region
    $region14: #{transformer_self_forward.1} parent=1 // pred_check
      _
    $region15: #{transformer_self_forward.1} parent=1 // pred_check_branch
      %53 = sbr.rel (0) target = $region17
    $region16: #{transformer_self_forward.1} parent=1 // pred_region
      %55 = vsyncadd [#allocation9], 0
      %s57 = sshll.u32 %s3, 4
      %s58 = int_to_ptr.hbm [resolvable:$true] %s57
      %s59 = sshll.u32 [#allocation8], 4
      %s60 = int_to_ptr.vmem [resolvable:$true] %s59
      %62 = dma.hbm_to_vmem [thread:$0]  %s58, 128, %s60, [#allocation9]
    $region17: #{transformer_self_forward.1} parent=1 // pred_fallthru
      _
    // Predicated region
    $region18: #{transformer_self_forward.1} parent=1 // pred_check
      _
    $region19: #{transformer_self_forward.1} parent=1 // pred_check_branch
      %64 = sbr.rel (0) target = $region21
    $region20: #{transformer_self_forward.1} parent=1 // pred_region
      %66 = dma.done [#allocation3], 256
    $region21: #{transformer_self_forward.1} parent=1 // pred_fallthru
      _
    // Predicated region
    $region22: #{transformer_self_forward.1} parent=1 // pred_check
      _
    $region23: #{transformer_self_forward.1} parent=1 // pred_check_branch
      %68 = sbr.rel (0) target = $region25
    $region24: #{transformer_self_forward.1} parent=1 // pred_region
      %70 = dma.done [#allocation6], 512
    $region25: #{transformer_self_forward.1} parent=1 // pred_fallthru
      _
    // Predicated region
    $region26: #{transformer_self_forward.1} parent=1 // pred_check
      _
    $region27: #{transformer_self_forward.1} parent=1 // pred_check_branch
      %72 = sbr.rel (0) target = $region29
    $region28: #{transformer_self_forward.1} parent=1 // pred_region
      %74 = dma.done [#allocation6], 512
    $region29: #{transformer_self_forward.1} parent=1 // pred_fallthru
      _
    // Predicated region
    $region30: #{transformer_self_forward.1} parent=1 // pred_check
      _
    $region31: #{transformer_self_forward.1} parent=1 // pred_check_branch
      %76 = sbr.rel (0) target = $region33
    $region32: #{transformer_self_forward.1} parent=1 // pred_region
      %78 = dma.done [#allocation9], 128
    $region33: #{transformer_self_forward.1} parent=1 // pred_fallthru
      _
    %v79 = vld [vmem:[#allocation8] sm:$0xff]
    %v80 = vld [vmem:[#allocation5] sm:$0xff]
    %v81 = vld [vmem:[#allocation5 + $0x8] sm:$0xff]
    %v82 = vld [vmem:[#allocation5 + $0x10] sm:$0xff]
    %v83 = vld [vmem:[#allocation5 + $0x18] sm:$0xff]
    %v84 = vld [vmem:[#allocation7] sm:$0xff]
    %v85 = vld [vmem:[#allocation7 + $0x8] sm:$0xff]
    %v86 = vld [vmem:[#allocation7 + $0x10] sm:$0xff]
    %v87 = vld [vmem:[#allocation7 + $0x18] sm:$0xff]
    %v88 = vld [vmem:[#allocation2] sm:$0x1]
    %v89 = vld [vmem:[#allocation2 + $0x2] sm:$0x1]
    %v90 = vld [vmem:[#allocation2 + $0x4] sm:$0x1]
    %v91 = vld [vmem:[#allocation2 + $0x6] sm:$0x1]
    %v92 = vld [vmem:[#allocation2 + $0x8] sm:$0x1]
    %v93 = vld [vmem:[#allocation2 + $0xa] sm:$0x1]
    %v94 = vld [vmem:[#allocation2 + $0xc] sm:$0x1]
    %v95 = vld [vmem:[#allocation2 + $0xe] sm:$0x1]
    %v104 = vrot.slane %v89, 7
    %vm105 = vcmask 1041409
    %v106 = vsel %vm105, %v104, %v88
    %v107 = vrot.slane %v90, 6
    %vm108 = vcmask 1042434
    %v109 = vsel %vm108, %v107, %v106
    %v110 = vrot.slane %v91, 5
    %vm111 = vcmask 1043459
    %v112 = vsel %vm111, %v110, %v109
    %v113 = vrot.slane %v92, 4
    %vm114 = vcmask 1044484
    %v115 = vsel %vm114, %v113, %v112
    %v116 = vrot.slane %v93, 3
    %vm117 = vcmask 1045509
    %v118 = vsel %vm117, %v116, %v115
    %v119 = vrot.slane %v94, 2
    %vm120 = vcmask 1046534
    %v121 = vsel %vm120, %v119, %v118
    %v122 = vrot.slane %v95, 1
    %vm123 = vcmask 1047559
    %v124 = vsel %vm123, %v122, %v121
    %vm126 = vcmask 261120
    %v127 = vsel %vm126, %v124, 0.0
    %128 = vadd.xlane.f32.xlu0 %v127
    %v129 = vpop.xlane.xlu0 %128
    %v130 = vrcp.pop 32.0
    %v131 = vmul.f32 32.0, %v130
    %v132 = vsub.f32 1.0, %v131
    %v133 = vmul.f32 %v130, %v132
    %v134 = vadd.f32 %v130, %v133
    %vm135 = vweird.f32 %v130
    %v136 = vsel %vm135, %v130, %v134
    %v137 = vmul.f32 %v129, %v136
    %v139 = vrot.slane %v137, 1
    %v140 = vrot.slane %v137, 2
    %v141 = vrot.slane %v137, 3
    %v142 = vrot.slane %v137, 4
    %v143 = vrot.slane %v137, 5
    %v144 = vrot.slane %v137, 6
    %v145 = vrot.slane %v137, 7
    %v154 = vsub.f32 %v88, %v137
    %v155 = vsub.f32 %v89, %v139
    %v156 = vsub.f32 %v90, %v140
    %v157 = vsub.f32 %v91, %v141
    %v158 = vsub.f32 %v92, %v142
    %v159 = vsub.f32 %v93, %v143
    %v160 = vsub.f32 %v94, %v144
    %v161 = vsub.f32 %v95, %v145
    %v162 = vmul.f32 %v154, %v154
    %v163 = vmul.f32 %v155, %v155
    %v164 = vmul.f32 %v156, %v156
    %v165 = vmul.f32 %v157, %v157
    %v166 = vmul.f32 %v158, %v158
    %v167 = vmul.f32 %v159, %v159
    %v168 = vmul.f32 %v160, %v160
    %v169 = vmul.f32 %v161, %v161
    %v178 = vrot.slane %v163, 7
    %v179 = vsel %vm105, %v178, %v162
    %v180 = vrot.slane %v164, 6
    %v181 = vsel %vm108, %v180, %v179
    %v182 = vrot.slane %v165, 5
    %v183 = vsel %vm111, %v182, %v181
    %v184 = vrot.slane %v166, 4
    %v185 = vsel %vm114, %v184, %v183
    %v186 = vrot.slane %v167, 3
    %v187 = vsel %vm117, %v186, %v185
    %v188 = vrot.slane %v168, 2
    %v189 = vsel %vm120, %v188, %v187
    %v190 = vrot.slane %v169, 1
    %v191 = vsel %vm123, %v190, %v189
    %v193 = vsel %vm126, %v191, 0.0
    %194 = vadd.xlane.f32.xlu0 %v193
    %v195 = vpop.xlane.xlu0 %194
    %v196 = vmul.f32 %v195, %v136
    %v197 = vadd.f32 %v196, 1e-05
    %v198 = vrsqrt.pop %v197
    %v199 = vmul.f32 %v198, %v197
    %v200 = vmul.f32 %v199, %v198
    %v201 = vmul.f32 0.5, %v200
    %v202 = vsub.f32 1.5, %v201
    %v203 = vmul.f32 %v198, %v202
    %vm204 = vweird.f32 %v197
    %vm205 = vweird.f32 %v198
    %vm206 = vmor %vm204, %vm205
    %v207 = vsel %vm206, %v198, %v203
    %v209 = vrot.slane %v207, 1
    %v210 = vrot.slane %v207, 2
    %v211 = vrot.slane %v207, 3
    %v212 = vrot.slane %v207, 4
    %v213 = vrot.slane %v207, 5
    %v214 = vrot.slane %v207, 6
    %v215 = vrot.slane %v207, 7
    %v224 = vmul.f32 %v154, %v207
    %v225 = vmul.f32 %v155, %v209
    %v226 = vmul.f32 %v156, %v210
    %v227 = vmul.f32 %v157, %v211
    %v228 = vmul.f32 %v158, %v212
    %v229 = vmul.f32 %v159, %v213
    %v230 = vmul.f32 %v160, %v214
    %v231 = vmul.f32 %v161, %v215
    %v232 = vperm.slane %v79, 0
    %v233 = vmul.f32 %v224, %v232
    %v234 = vmul.f32 %v225, %v232
    %v235 = vmul.f32 %v226, %v232
    %v236 = vmul.f32 %v227, %v232
    %v237 = vmul.f32 %v228, %v232
    %v238 = vmul.f32 %v229, %v232
    %v239 = vmul.f32 %v230, %v232
    %v240 = vmul.f32 %v231, %v232
    %v241 = vperm.slane %v79, 1
    %v242 = vadd.f32 %v233, %v241
    %v243 = vadd.f32 %v234, %v241
    %v244 = vadd.f32 %v235, %v241
    %v245 = vadd.f32 %v236, %v241
    %v246 = vadd.f32 %v237, %v241
    %v247 = vadd.f32 %v238, %v241
    %v248 = vadd.f32 %v239, %v241
    %v249 = vadd.f32 %v240, %v241
    %v258 = vrot.slane %v243, 7
    %v259 = vsel %vm105, %v258, %v242
    %v260 = vrot.slane %v244, 6
    %v261 = vsel %vm108, %v260, %v259
    %v262 = vrot.slane %v245, 5
    %v263 = vsel %vm111, %v262, %v261
    %v264 = vrot.slane %v246, 4
    %v265 = vsel %vm114, %v264, %v263
    %v266 = vrot.slane %v247, 3
    %v267 = vsel %vm117, %v266, %v265
    %v268 = vrot.slane %v248, 2
    %v269 = vsel %vm120, %v268, %v267
    %v270 = vrot.slane %v249, 1
    %v271 = vsel %vm123, %v270, %v269
    %v272 = vsel %vm126, %v271, 0
    %274 = vmatpush.msra.mxu0 0.0
    %275 = vmatpush.msra.mxu0 0.0
    %276 = vmatpush.msra.mxu0 0.0
    %277 = vmatpush.msra.mxu0 0.0
    %278 = vmatpush.msra.mxu0 0.0
    %279 = vmatpush.msra.mxu0 0.0
    %280 = vmatpush.msra.mxu0 0.0
    %281 = vmatpush.msra.mxu0 0.0
    %282 = vmatpush.msra.mxu0 0.0
    %283 = vmatpush.msra.mxu0 0.0
    %284 = vmatpush.msra.mxu0 0.0
    %285 = vmatpush.msra.mxu0 0.0
    %286 = vmatpush.msra.mxu0 %v83
    %287 = vmatpush.msra.mxu0 %v82
    %288 = vmatpush.msra.mxu0 %v81
    %289 = vmatpush.msra.mxu0 %v80
    %290 = vmatmul.f32.gmra.mxu0 %v272
    %v291 = vpop.f32.mrf.mxu0
    %v292 = vadd.f32 0.0, %v291
    %293 = vdwg.mxu0
    %v294 = vperm.slane %v79, 4
    %v295 = vadd.f32 %v292, %v294
    %v296 = vperm.slane %v79, 5
    %298 = vrot.lane.b32.xlu0 %v296, 32
    %v299 = vpop.permute.xlu0 %298
    %v301 = vadd.f32 %v292, %v299
    %v302 = vperm.slane %v79, 6
    %304 = vrot.lane.b32.xlu0 %v302, 64
    %v305 = vpop.permute.xlu0 %304
    %v307 = vadd.f32 %v292, %v305
    %309 = vrot.lane.b32.xlu0 %v301, 96
    %v310 = vpop.permute.xlu0 %309
    %vm311 = vcmask 64512
    %v313 = vsel %vm311, %v295, 0
    %v315 = vsel %vm311, %v310, 0
    %317 = vmatpush.xpose.msra.mxu0 0.0
    %318 = vmatpush.xpose.msra.mxu0 0.0
    %319 = vmatpush.xpose.msra.mxu0 0.0
    %320 = vmatpush.xpose.msra.mxu0 0.0
    %321 = vmatpush.xpose.msra.mxu0 0.0
    %322 = vmatpush.xpose.msra.mxu0 0.0
    %323 = vmatpush.xpose.msra.mxu0 0.0
    %324 = vmatpush.xpose.msra.mxu0 0.0
    %325 = vmatpush.xpose.msra.mxu0 0.0
    %326 = vmatpush.xpose.msra.mxu0 0.0
    %327 = vmatpush.xpose.msra.mxu0 0.0
    %328 = vmatpush.xpose.msra.mxu0 0.0
    %329 = vmatpush.xpose.msra.mxu0 0.0
    %330 = vmatpush.xpose.msra.mxu0 0.0
    %331 = vmatpush.xpose.msra.mxu0 0.0
    %332 = vmatpush.xpose.msra.mxu0 %v315
    %333 = vmatmul.f32.gmra.mxu0 %v313
    %v334 = vpop.f32.mrf.mxu0
    %v335 = vadd.f32 0.0, %v334
    %336 = vdwg.mxu0
    %v337 = vsel %vm311, %v335, -inf
    %338 = vmax.xlane.f32.xlu0 %v337
    %v339 = vpop.xlane.xlu0 %338
    %v340 = vsub.f32 %v335, %v339
    %v341 = vmul.f32 %v340, 1.442695
    %v342 = vpow.pop %v341
    %v343 = vsel %vm311, %v342, 0.0
    %344 = vadd.xlane.f32.xlu0 %v343
    %v345 = vpop.xlane.xlu0 %344
    %v346 = vrcp.pop %v345
    %v347 = vmul.f32 %v345, %v346
    %v348 = vsub.f32 2.0, %v347
    %v349 = vmul.f32 %v346, %v348
    %v350 = vmul.f32 %v342, %v349
    %352 = vrot.lane.b32.xlu0 %v307, 64
    %v353 = vpop.permute.xlu0 %352
    %v356 = vsel %vm311, %v350, 0
    %358 = vmatpush.msra.mxu0 0.0
    %359 = vmatpush.msra.mxu0 0.0
    %360 = vmatpush.msra.mxu0 0.0
    %361 = vmatpush.msra.mxu0 0.0
    %362 = vmatpush.msra.mxu0 0.0
    %363 = vmatpush.msra.mxu0 0.0
    %364 = vmatpush.msra.mxu0 0.0
    %365 = vmatpush.msra.mxu0 0.0
    %366 = vmatpush.msra.mxu0 0.0
    %367 = vmatpush.msra.mxu0 0.0
    %368 = vmatpush.msra.mxu0 0.0
    %369 = vmatpush.msra.mxu0 0.0
    %370 = vmatpush.msra.mxu0 0.0
    %371 = vmatpush.msra.mxu0 0.0
    %372 = vmatpush.msra.mxu0 0.0
    %373 = vmatpush.msra.mxu0 %v353
    %374 = vmatmul.f32.gmra.mxu0 %v356
    %v375 = vpop.f32.mrf.mxu0
    %v376 = vadd.f32 0.0, %v375
    %377 = vdwg.mxu0
    %378 = vrot.lane.b32.xlu0 %v295, 120
    %v379 = vpop.permute.xlu0 %378
    %380 = vrot.lane.b32.xlu0 %v301, 88
    %v381 = vpop.permute.xlu0 %380
    %v382 = vsel %vm311, %v379, 0
    %v384 = vsel %vm311, %v381, 0
    %386 = vmatpush.xpose.msra.mxu0 0.0
    %387 = vmatpush.xpose.msra.mxu0 0.0
    %388 = vmatpush.xpose.msra.mxu0 0.0
    %389 = vmatpush.xpose.msra.mxu0 0.0
    %390 = vmatpush.xpose.msra.mxu0 0.0
    %391 = vmatpush.xpose.msra.mxu0 0.0
    %392 = vmatpush.xpose.msra.mxu0 0.0
    %393 = vmatpush.xpose.msra.mxu0 0.0
    %394 = vmatpush.xpose.msra.mxu0 0.0
    %395 = vmatpush.xpose.msra.mxu0 0.0
    %396 = vmatpush.xpose.msra.mxu0 0.0
    %397 = vmatpush.xpose.msra.mxu0 0.0
    %398 = vmatpush.xpose.msra.mxu0 0.0
    %399 = vmatpush.xpose.msra.mxu0 0.0
    %400 = vmatpush.xpose.msra.mxu0 0.0
    %401 = vmatpush.xpose.msra.mxu0 %v384
    %402 = vmatmul.f32.gmra.mxu0 %v382
    %v403 = vpop.f32.mrf.mxu0
    %v404 = vadd.f32 0.0, %v403
    %405 = vdwg.mxu0
    %v406 = vsel %vm311, %v404, -inf
    %407 = vmax.xlane.f32.xlu0 %v406
    %v408 = vpop.xlane.xlu0 %407
    %v409 = vsub.f32 %v404, %v408
    %v410 = vmul.f32 %v409, 1.442695
    %v411 = vpow.pop %v410
    %v412 = vsel %vm311, %v411, 0.0
    %413 = vadd.xlane.f32.xlu0 %v412
    %v414 = vpop.xlane.xlu0 %413
    %v415 = vrcp.pop %v414
    %v416 = vmul.f32 %v414, %v415
    %v417 = vsub.f32 2.0, %v416
    %v418 = vmul.f32 %v415, %v417
    %v419 = vmul.f32 %v411, %v418
    %420 = vrot.lane.b32.xlu0 %v307, 56
    %v421 = vpop.permute.xlu0 %420
    %v424 = vsel %vm311, %v419, 0
    %426 = vmatpush.msra.mxu0 0.0
    %427 = vmatpush.msra.mxu0 0.0
    %428 = vmatpush.msra.mxu0 0.0
    %429 = vmatpush.msra.mxu0 0.0
    %430 = vmatpush.msra.mxu0 0.0
    %431 = vmatpush.msra.mxu0 0.0
    %432 = vmatpush.msra.mxu0 0.0
    %433 = vmatpush.msra.mxu0 0.0
    %434 = vmatpush.msra.mxu0 0.0
    %435 = vmatpush.msra.mxu0 0.0
    %436 = vmatpush.msra.mxu0 0.0
    %437 = vmatpush.msra.mxu0 0.0
    %438 = vmatpush.msra.mxu0 0.0
    %439 = vmatpush.msra.mxu0 0.0
    %440 = vmatpush.msra.mxu0 0.0
    %441 = vmatpush.msra.mxu0 %v421
    %442 = vmatmul.f32.gmra.mxu0 %v424
    %v443 = vpop.f32.mrf.mxu0
    %v444 = vadd.f32 0.0, %v443
    %445 = vdwg.mxu0
    %v447 = vsel %vm311, %v444, 0
    %449 = vmatpush.msra.mxu0 0.0
    %450 = vmatpush.msra.mxu0 0.0
    %451 = vmatpush.msra.mxu0 0.0
    %452 = vmatpush.msra.mxu0 0.0
    %453 = vmatpush.msra.mxu0 0.0
    %454 = vmatpush.msra.mxu0 0.0
    %455 = vmatpush.msra.mxu0 0.0
    %456 = vmatpush.msra.mxu0 0.0
    %457 = vmatpush.msra.mxu0 0.0
    %458 = vmatpush.msra.mxu0 0.0
    %459 = vmatpush.msra.mxu0 0.0
    %460 = vmatpush.msra.mxu0 0.0
    %461 = vmatpush.msra.mxu0 0.0
    %462 = vmatpush.msra.mxu0 0.0
    %463 = vmatpush.msra.mxu0 0.0
    %464 = vmatpush.msra.mxu0 %v85
    %465 = vmatmul.f32.gmra.mxu0 %v447
    %v466 = vpop.f32.mrf.mxu0
    %v467 = vadd.f32 0.0, %v466
    %468 = vdwg.mxu0
    %v470 = vsel %vm311, %v376, 0
    %472 = vmatpush.msra.mxu0 0.0
    %473 = vmatpush.msra.mxu0 0.0
    %474 = vmatpush.msra.mxu0 0.0
    %475 = vmatpush.msra.mxu0 0.0
    %476 = vmatpush.msra.mxu0 0.0
    %477 = vmatpush.msra.mxu0 0.0
    %478 = vmatpush.msra.mxu0 0.0
    %479 = vmatpush.msra.mxu0 0.0
    %480 = vmatpush.msra.mxu0 0.0
    %481 = vmatpush.msra.mxu0 0.0
    %482 = vmatpush.msra.mxu0 0.0
    %483 = vmatpush.msra.mxu0 0.0
    %484 = vmatpush.msra.mxu0 0.0
    %485 = vmatpush.msra.mxu0 0.0
    %486 = vmatpush.msra.mxu0 0.0
    %487 = vmatpush.msra.mxu0 %v84
    %488 = vmatmul.f32.gmra.mxu0 %v470
    %v489 = vpop.f32.mrf.mxu0
    %v490 = vadd.f32 %v467, %v489
    %491 = vdwg.mxu0
    %492 = vrot.lane.b32.xlu0 %v295, 112
    %v493 = vpop.permute.xlu0 %492
    %494 = vrot.lane.b32.xlu0 %v301, 80
    %v495 = vpop.permute.xlu0 %494
    %v496 = vsel %vm311, %v493, 0
    %v498 = vsel %vm311, %v495, 0
    %500 = vmatpush.xpose.msra.mxu0 0.0
    %501 = vmatpush.xpose.msra.mxu0 0.0
    %502 = vmatpush.xpose.msra.mxu0 0.0
    %503 = vmatpush.xpose.msra.mxu0 0.0
    %504 = vmatpush.xpose.msra.mxu0 0.0
    %505 = vmatpush.xpose.msra.mxu0 0.0
    %506 = vmatpush.xpose.msra.mxu0 0.0
    %507 = vmatpush.xpose.msra.mxu0 0.0
    %508 = vmatpush.xpose.msra.mxu0 0.0
    %509 = vmatpush.xpose.msra.mxu0 0.0
    %510 = vmatpush.xpose.msra.mxu0 0.0
    %511 = vmatpush.xpose.msra.mxu0 0.0
    %512 = vmatpush.xpose.msra.mxu0 0.0
    %513 = vmatpush.xpose.msra.mxu0 0.0
    %514 = vmatpush.xpose.msra.mxu0 0.0
    %515 = vmatpush.xpose.msra.mxu0 %v498
    %516 = vmatmul.f32.gmra.mxu0 %v496
    %v517 = vpop.f32.mrf.mxu0
    %v518 = vadd.f32 0.0, %v517
    %519 = vdwg.mxu0
    %v520 = vsel %vm311, %v518, -inf
    %521 = vmax.xlane.f32.xlu0 %v520
    %v522 = vpop.xlane.xlu0 %521
    %v523 = vsub.f32 %v518, %v522
    %v524 = vmul.f32 %v523, 1.442695
    %v525 = vpow.pop %v524
    %v526 = vsel %vm311, %v525, 0.0
    %527 = vadd.xlane.f32.xlu0 %v526
    %v528 = vpop.xlane.xlu0 %527
    %v529 = vrcp.pop %v528
    %v530 = vmul.f32 %v528, %v529
    %v531 = vsub.f32 2.0, %v530
    %v532 = vmul.f32 %v529, %v531
    %v533 = vmul.f32 %v525, %v532
    %534 = vrot.lane.b32.xlu0 %v307, 48
    %v535 = vpop.permute.xlu0 %534
    %v538 = vsel %vm311, %v533, 0
    %540 = vmatpush.msra.mxu0 0.0
    %541 = vmatpush.msra.mxu0 0.0
    %542 = vmatpush.msra.mxu0 0.0
    %543 = vmatpush.msra.mxu0 0.0
    %544 = vmatpush.msra.mxu0 0.0
    %545 = vmatpush.msra.mxu0 0.0
    %546 = vmatpush.msra.mxu0 0.0
    %547 = vmatpush.msra.mxu0 0.0
    %548 = vmatpush.msra.mxu0 0.0
    %549 = vmatpush.msra.mxu0 0.0
    %550 = vmatpush.msra.mxu0 0.0
    %551 = vmatpush.msra.mxu0 0.0
    %552 = vmatpush.msra.mxu0 0.0
    %553 = vmatpush.msra.mxu0 0.0
    %554 = vmatpush.msra.mxu0 0.0
    %555 = vmatpush.msra.mxu0 %v535
    %556 = vmatmul.f32.gmra.mxu0 %v538
    %v557 = vpop.f32.mrf.mxu0
    %v558 = vadd.f32 0.0, %v557
    %559 = vdwg.mxu0
    %v561 = vsel %vm311, %v558, 0
    %563 = vmatpush.msra.mxu0 0.0
    %564 = vmatpush.msra.mxu0 0.0
    %565 = vmatpush.msra.mxu0 0.0
    %566 = vmatpush.msra.mxu0 0.0
    %567 = vmatpush.msra.mxu0 0.0
    %568 = vmatpush.msra.mxu0 0.0
    %569 = vmatpush.msra.mxu0 0.0
    %570 = vmatpush.msra.mxu0 0.0
    %571 = vmatpush.msra.mxu0 0.0
    %572 = vmatpush.msra.mxu0 0.0
    %573 = vmatpush.msra.mxu0 0.0
    %574 = vmatpush.msra.mxu0 0.0
    %575 = vmatpush.msra.mxu0 0.0
    %576 = vmatpush.msra.mxu0 0.0
    %577 = vmatpush.msra.mxu0 0.0
    %578 = vmatpush.msra.mxu0 %v86
    %579 = vmatmul.f32.gmra.mxu0 %v561
    %v580 = vpop.f32.mrf.mxu0
    %v581 = vadd.f32 0.0, %v580
    %582 = vdwg.mxu0
    %v583 = vadd.f32 %v490, %v581
    %584 = vrot.lane.b32.xlu0 %v295, 104
    %v585 = vpop.permute.xlu0 %584
    %586 = vrot.lane.b32.xlu0 %v301, 72
    %v587 = vpop.permute.xlu0 %586
    %v588 = vsel %vm311, %v585, 0
    %v590 = vsel %vm311, %v587, 0
    %592 = vmatpush.xpose.msra.mxu0 0.0
    %593 = vmatpush.xpose.msra.mxu0 0.0
    %594 = vmatpush.xpose.msra.mxu0 0.0
    %595 = vmatpush.xpose.msra.mxu0 0.0
    %596 = vmatpush.xpose.msra.mxu0 0.0
    %597 = vmatpush.xpose.msra.mxu0 0.0
    %598 = vmatpush.xpose.msra.mxu0 0.0
    %599 = vmatpush.xpose.msra.mxu0 0.0
    %600 = vmatpush.xpose.msra.mxu0 0.0
    %601 = vmatpush.xpose.msra.mxu0 0.0
    %602 = vmatpush.xpose.msra.mxu0 0.0
    %603 = vmatpush.xpose.msra.mxu0 0.0
    %604 = vmatpush.xpose.msra.mxu0 0.0
    %605 = vmatpush.xpose.msra.mxu0 0.0
    %606 = vmatpush.xpose.msra.mxu0 0.0
    %607 = vmatpush.xpose.msra.mxu0 %v590
    %608 = vmatmul.f32.gmra.mxu0 %v588
    %v609 = vpop.f32.mrf.mxu0
    %v610 = vadd.f32 0.0, %v609
    %611 = vdwg.mxu0
    %v612 = vsel %vm311, %v610, -inf
    %613 = vmax.xlane.f32.xlu0 %v612
    %v614 = vpop.xlane.xlu0 %613
    %v615 = vsub.f32 %v610, %v614
    %v616 = vmul.f32 %v615, 1.442695
    %v617 = vpow.pop %v616
    %v618 = vsel %vm311, %v617, 0.0
    %619 = vadd.xlane.f32.xlu0 %v618
    %v620 = vpop.xlane.xlu0 %619
    %v621 = vrcp.pop %v620
    %v622 = vmul.f32 %v620, %v621
    %v623 = vsub.f32 2.0, %v622
    %v624 = vmul.f32 %v621, %v623
    %v625 = vmul.f32 %v617, %v624
    %626 = vrot.lane.b32.xlu0 %v307, 40
    %v627 = vpop.permute.xlu0 %626
    %v630 = vsel %vm311, %v625, 0
    %632 = vmatpush.msra.mxu0 0.0
    %633 = vmatpush.msra.mxu0 0.0
    %634 = vmatpush.msra.mxu0 0.0
    %635 = vmatpush.msra.mxu0 0.0
    %636 = vmatpush.msra.mxu0 0.0
    %637 = vmatpush.msra.mxu0 0.0
    %638 = vmatpush.msra.mxu0 0.0
    %639 = vmatpush.msra.mxu0 0.0
    %640 = vmatpush.msra.mxu0 0.0
    %641 = vmatpush.msra.mxu0 0.0
    %642 = vmatpush.msra.mxu0 0.0
    %643 = vmatpush.msra.mxu0 0.0
    %644 = vmatpush.msra.mxu0 0.0
    %645 = vmatpush.msra.mxu0 0.0
    %646 = vmatpush.msra.mxu0 0.0
    %647 = vmatpush.msra.mxu0 %v627
    %648 = vmatmul.f32.gmra.mxu0 %v630
    %v649 = vpop.f32.mrf.mxu0
    %v650 = vadd.f32 0.0, %v649
    %651 = vdwg.mxu0
    %v653 = vsel %vm311, %v650, 0
    %655 = vmatpush.msra.mxu0 0.0
    %656 = vmatpush.msra.mxu0 0.0
    %657 = vmatpush.msra.mxu0 0.0
    %658 = vmatpush.msra.mxu0 0.0
    %659 = vmatpush.msra.mxu0 0.0
    %660 = vmatpush.msra.mxu0 0.0
    %661 = vmatpush.msra.mxu0 0.0
    %662 = vmatpush.msra.mxu0 0.0
    %663 = vmatpush.msra.mxu0 0.0
    %664 = vmatpush.msra.mxu0 0.0
    %665 = vmatpush.msra.mxu0 0.0
    %666 = vmatpush.msra.mxu0 0.0
    %667 = vmatpush.msra.mxu0 0.0
    %668 = vmatpush.msra.mxu0 0.0
    %669 = vmatpush.msra.mxu0 0.0
    %670 = vmatpush.msra.mxu0 %v87
    %671 = vmatmul.f32.gmra.mxu0 %v653
    %v672 = vpop.f32.mrf.mxu0
    %v673 = vadd.f32 0.0, %v672
    %674 = vdwg.mxu0
    %v675 = vadd.f32 %v583, %v673
    %v676 = vperm.slane %v79, 7
    %v677 = vadd.f32 %v675, %v676
    %v678 = vsel %vm126, %v677, 0.0
    %679 = vadd.xlane.f32.xlu0 %v678
    %v680 = vpop.xlane.xlu0 %679
    %v681 = vmul.f32 %v680, %v136
    %v682 = vsub.f32 %v677, %v681
    %v683 = vmul.f32 %v682, %v682
    %v684 = vsel %vm126, %v683, 0.0
    %685 = vadd.xlane.f32.xlu0 %v684
    %v686 = vpop.xlane.xlu0 %685
    %v687 = vmul.f32 %v686, %v136
    %v688 = vadd.f32 %v687, 1e-05
    %v689 = vrsqrt.pop %v688
    %v690 = vmul.f32 %v689, %v688
    %v691 = vmul.f32 %v690, %v689
    %v692 = vmul.f32 0.5, %v691
    %v693 = vsub.f32 1.5, %v692
    %v694 = vmul.f32 %v689, %v693
    %vm695 = vweird.f32 %v688
    %vm696 = vweird.f32 %v689
    %vm697 = vmor %vm695, %vm696
    %v698 = vsel %vm697, %v689, %v694
    %v699 = vmul.f32 %v682, %v698
    %v700 = vperm.slane %v79, 2
    %v701 = vmul.f32 %v699, %v700
    %v702 = vperm.slane %v79, 3
    %v703 = vadd.f32 %v701, %v702
    %v705 = vrot.slane %v703, 1
    %v706 = vrot.slane %v703, 2
    %v707 = vrot.slane %v703, 3
    %v708 = vrot.slane %v703, 4
    %v709 = vrot.slane %v703, 5
    %v710 = vrot.slane %v703, 6
    %v711 = vrot.slane %v703, 7
    %vm719 = vcmask 253952
    %720 = vst.msk [vmem:[#allocation10] sm:$0x1] %vm719, %v703
    %721 = vst.msk [vmem:[#allocation10 + $0x2] sm:$0x1] %vm719, %v705
    %722 = vst.msk [vmem:[#allocation10 + $0x4] sm:$0x1] %vm719, %v706
    %723 = vst.msk [vmem:[#allocation10 + $0x6] sm:$0x1] %vm719, %v707
    %724 = vst.msk [vmem:[#allocation10 + $0x8] sm:$0x1] %vm719, %v708
    %725 = vst.msk [vmem:[#allocation10 + $0xa] sm:$0x1] %vm719, %v709
    %726 = vst.msk [vmem:[#allocation10 + $0xc] sm:$0x1] %vm719, %v710
    %727 = vst.msk [vmem:[#allocation10 + $0xe] sm:$0x1] %vm719, %v711
    %v728 = vld [vmem:[#allocation2 + $0x1] sm:$0x1]
    %v729 = vld [vmem:[#allocation2 + $0x3] sm:$0x1]
    %v730 = vld [vmem:[#allocation2 + $0x5] sm:$0x1]
    %v731 = vld [vmem:[#allocation2 + $0x7] sm:$0x1]
    %v732 = vld [vmem:[#allocation2 + $0x9] sm:$0x1]
    %v733 = vld [vmem:[#allocation2 + $0xb] sm:$0x1]
    %v734 = vld [vmem:[#allocation2 + $0xd] sm:$0x1]
    %v735 = vld [vmem:[#allocation2 + $0xf] sm:$0x1]
    %v744 = vrot.slane %v729, 7
    %v745 = vsel %vm105, %v744, %v728
    %v746 = vrot.slane %v730, 6
    %v747 = vsel %vm108, %v746, %v745
    %v748 = vrot.slane %v731, 5
    %v749 = vsel %vm111, %v748, %v747
    %v750 = vrot.slane %v732, 4
    %v751 = vsel %vm114, %v750, %v749
    %v752 = vrot.slane %v733, 3
    %v753 = vsel %vm117, %v752, %v751
    %v754 = vrot.slane %v734, 2
    %v755 = vsel %vm120, %v754, %v753
    %v756 = vrot.slane %v735, 1
    %v757 = vsel %vm123, %v756, %v755
    %v759 = vsel %vm126, %v757, 0.0
    %760 = vadd.xlane.f32.xlu0 %v759
    %v761 = vpop.xlane.xlu0 %760
    %v762 = vmul.f32 %v761, %v136
    %v764 = vrot.slane %v762, 1
    %v765 = vrot.slane %v762, 2
    %v766 = vrot.slane %v762, 3
    %v767 = vrot.slane %v762, 4
    %v768 = vrot.slane %v762, 5
    %v769 = vrot.slane %v762, 6
    %v770 = vrot.slane %v762, 7
    %v779 = vsub.f32 %v728, %v762
    %v780 = vsub.f32 %v729, %v764
    %v781 = vsub.f32 %v730, %v765
    %v782 = vsub.f32 %v731, %v766
    %v783 = vsub.f32 %v732, %v767
    %v784 = vsub.f32 %v733, %v768
    %v785 = vsub.f32 %v734, %v769
    %v786 = vsub.f32 %v735, %v770
    %v787 = vmul.f32 %v779, %v779
    %v788 = vmul.f32 %v780, %v780
    %v789 = vmul.f32 %v781, %v781
    %v790 = vmul.f32 %v782, %v782
    %v791 = vmul.f32 %v783, %v783
    %v792 = vmul.f32 %v784, %v784
    %v793 = vmul.f32 %v785, %v785
    %v794 = vmul.f32 %v786, %v786
    %v803 = vrot.slane %v788, 7
    %v804 = vsel %vm105, %v803, %v787
    %v805 = vrot.slane %v789, 6
    %v806 = vsel %vm108, %v805, %v804
    %v807 = vrot.slane %v790, 5
    %v808 = vsel %vm111, %v807, %v806
    %v809 = vrot.slane %v791, 4
    %v810 = vsel %vm114, %v809, %v808
    %v811 = vrot.slane %v792, 3
    %v812 = vsel %vm117, %v811, %v810
    %v813 = vrot.slane %v793, 2
    %v814 = vsel %vm120, %v813, %v812
    %v815 = vrot.slane %v794, 1
    %v816 = vsel %vm123, %v815, %v814
    %v818 = vsel %vm126, %v816, 0.0
    %819 = vadd.xlane.f32.xlu0 %v818
    %v820 = vpop.xlane.xlu0 %819
    %v821 = vmul.f32 %v820, %v136
    %v822 = vadd.f32 %v821, 1e-05
    %v823 = vrsqrt.pop %v822
    %v824 = vmul.f32 %v823, %v822
    %v825 = vmul.f32 %v824, %v823
    %v826 = vmul.f32 0.5, %v825
    %v827 = vsub.f32 1.5, %v826
    %v828 = vmul.f32 %v823, %v827
    %vm829 = vweird.f32 %v822
    %vm830 = vweird.f32 %v823
    %vm831 = vmor %vm829, %vm830
    %v832 = vsel %vm831, %v823, %v828
    %v834 = vrot.slane %v832, 1
    %v835 = vrot.slane %v832, 2
    %v836 = vrot.slane %v832, 3
    %v837 = vrot.slane %v832, 4
    %v838 = vrot.slane %v832, 5
    %v839 = vrot.slane %v832, 6
    %v840 = vrot.slane %v832, 7
    %v849 = vmul.f32 %v779, %v832
    %v850 = vmul.f32 %v780, %v834
    %v851 = vmul.f32 %v781, %v835
    %v852 = vmul.f32 %v782, %v836
    %v853 = vmul.f32 %v783, %v837
    %v854 = vmul.f32 %v784, %v838
    %v855 = vmul.f32 %v785, %v839
    %v856 = vmul.f32 %v786, %v840
    %v857 = vmul.f32 %v849, %v232
    %v858 = vmul.f32 %v850, %v232
    %v859 = vmul.f32 %v851, %v232
    %v860 = vmul.f32 %v852, %v232
    %v861 = vmul.f32 %v853, %v232
    %v862 = vmul.f32 %v854, %v232
    %v863 = vmul.f32 %v855, %v232
    %v864 = vmul.f32 %v856, %v232
    %v865 = vadd.f32 %v857, %v241
    %v866 = vadd.f32 %v858, %v241
    %v867 = vadd.f32 %v859, %v241
    %v868 = vadd.f32 %v860, %v241
    %v869 = vadd.f32 %v861, %v241
    %v870 = vadd.f32 %v862, %v241
    %v871 = vadd.f32 %v863, %v241
    %v872 = vadd.f32 %v864, %v241
    %v881 = vrot.slane %v866, 7
    %v882 = vsel %vm105, %v881, %v865
    %v883 = vrot.slane %v867, 6
    %v884 = vsel %vm108, %v883, %v882
    %v885 = vrot.slane %v868, 5
    %v886 = vsel %vm111, %v885, %v884
    %v887 = vrot.slane %v869, 4
    %v888 = vsel %vm114, %v887, %v886
    %v889 = vrot.slane %v870, 3
    %v890 = vsel %vm117, %v889, %v888
    %v891 = vrot.slane %v871, 2
    %v892 = vsel %vm120, %v891, %v890
    %v893 = vrot.slane %v872, 1
    %v894 = vsel %vm123, %v893, %v892
    %v895 = vsel %vm126, %v894, 0
    %897 = vmatpush.msra.mxu0 0.0
    %898 = vmatpush.msra.mxu0 0.0
    %899 = vmatpush.msra.mxu0 0.0
    %900 = vmatpush.msra.mxu0 0.0
    %901 = vmatpush.msra.mxu0 0.0
    %902 = vmatpush.msra.mxu0 0.0
    %903 = vmatpush.msra.mxu0 0.0
    %904 = vmatpush.msra.mxu0 0.0
    %905 = vmatpush.msra.mxu0 0.0
    %906 = vmatpush.msra.mxu0 0.0
    %907 = vmatpush.msra.mxu0 0.0
    %908 = vmatpush.msra.mxu0 0.0
    %909 = vmatpush.msra.mxu0 %v83
    %910 = vmatpush.msra.mxu0 %v82
    %911 = vmatpush.msra.mxu0 %v81
    %912 = vmatpush.msra.mxu0 %v80
    %913 = vmatmul.f32.gmra.mxu0 %v895
    %v914 = vpop.f32.mrf.mxu0
    %v915 = vadd.f32 0.0, %v914
    %916 = vdwg.mxu0
    %v917 = vadd.f32 %v915, %v294
    %v918 = vadd.f32 %v915, %v299
    %v919 = vadd.f32 %v915, %v305
    %921 = vrot.lane.b32.xlu0 %v918, 96
    %v922 = vpop.permute.xlu0 %921
    %v924 = vsel %vm311, %v917, 0
    %v926 = vsel %vm311, %v922, 0
    %928 = vmatpush.xpose.msra.mxu0 0.0
    %929 = vmatpush.xpose.msra.mxu0 0.0
    %930 = vmatpush.xpose.msra.mxu0 0.0
    %931 = vmatpush.xpose.msra.mxu0 0.0
    %932 = vmatpush.xpose.msra.mxu0 0.0
    %933 = vmatpush.xpose.msra.mxu0 0.0
    %934 = vmatpush.xpose.msra.mxu0 0.0
    %935 = vmatpush.xpose.msra.mxu0 0.0
    %936 = vmatpush.xpose.msra.mxu0 0.0
    %937 = vmatpush.xpose.msra.mxu0 0.0
    %938 = vmatpush.xpose.msra.mxu0 0.0
    %939 = vmatpush.xpose.msra.mxu0 0.0
    %940 = vmatpush.xpose.msra.mxu0 0.0
    %941 = vmatpush.xpose.msra.mxu0 0.0
    %942 = vmatpush.xpose.msra.mxu0 0.0
    %943 = vmatpush.xpose.msra.mxu0 %v926
    %944 = vmatmul.f32.gmra.mxu0 %v924
    %v945 = vpop.f32.mrf.mxu0
    %v946 = vadd.f32 0.0, %v945
    %947 = vdwg.mxu0
    %v948 = vsel %vm311, %v946, -inf
    %949 = vmax.xlane.f32.xlu0 %v948
    %v950 = vpop.xlane.xlu0 %949
    %v951 = vsub.f32 %v946, %v950
    %v952 = vmul.f32 %v951, 1.442695
    %v953 = vpow.pop %v952
    %v954 = vsel %vm311, %v953, 0.0
    %955 = vadd.xlane.f32.xlu0 %v954
    %v956 = vpop.xlane.xlu0 %955
    %v957 = vrcp.pop %v956
    %v958 = vmul.f32 %v956, %v957
    %v959 = vsub.f32 2.0, %v958
    %v960 = vmul.f32 %v957, %v959
    %v961 = vmul.f32 %v953, %v960
    %963 = vrot.lane.b32.xlu0 %v919, 64
    %v964 = vpop.permute.xlu0 %963
    %v967 = vsel %vm311, %v961, 0
    %969 = vmatpush.msra.mxu0 0.0
    %970 = vmatpush.msra.mxu0 0.0
    %971 = vmatpush.msra.mxu0 0.0
    %972 = vmatpush.msra.mxu0 0.0
    %973 = vmatpush.msra.mxu0 0.0
    %974 = vmatpush.msra.mxu0 0.0
    %975 = vmatpush.msra.mxu0 0.0
    %976 = vmatpush.msra.mxu0 0.0
    %977 = vmatpush.msra.mxu0 0.0
    %978 = vmatpush.msra.mxu0 0.0
    %979 = vmatpush.msra.mxu0 0.0
    %980 = vmatpush.msra.mxu0 0.0
    %981 = vmatpush.msra.mxu0 0.0
    %982 = vmatpush.msra.mxu0 0.0
    %983 = vmatpush.msra.mxu0 0.0
    %984 = vmatpush.msra.mxu0 %v964
    %985 = vmatmul.f32.gmra.mxu0 %v967
    %v986 = vpop.f32.mrf.mxu0
    %v987 = vadd.f32 0.0, %v986
    %988 = vdwg.mxu0
    %989 = vrot.lane.b32.xlu0 %v917, 120
    %v990 = vpop.permute.xlu0 %989
    %991 = vrot.lane.b32.xlu0 %v918, 88
    %v992 = vpop.permute.xlu0 %991
    %v993 = vsel %vm311, %v990, 0
    %v995 = vsel %vm311, %v992, 0
    %997 = vmatpush.xpose.msra.mxu0 0.0
    %998 = vmatpush.xpose.msra.mxu0 0.0
    %999 = vmatpush.xpose.msra.mxu0 0.0
    %1000 = vmatpush.xpose.msra.mxu0 0.0
    %1001 = vmatpush.xpose.msra.mxu0 0.0
    %1002 = vmatpush.xpose.msra.mxu0 0.0
    %1003 = vmatpush.xpose.msra.mxu0 0.0
    %1004 = vmatpush.xpose.msra.mxu0 0.0
    %1005 = vmatpush.xpose.msra.mxu0 0.0
    %1006 = vmatpush.xpose.msra.mxu0 0.0
    %1007 = vmatpush.xpose.msra.mxu0 0.0
    %1008 = vmatpush.xpose.msra.mxu0 0.0
    %1009 = vmatpush.xpose.msra.mxu0 0.0
    %1010 = vmatpush.xpose.msra.mxu0 0.0
    %1011 = vmatpush.xpose.msra.mxu0 0.0
    %1012 = vmatpush.xpose.msra.mxu0 %v995
    %1013 = vmatmul.f32.gmra.mxu0 %v993
    %v1014 = vpop.f32.mrf.mxu0
    %v1015 = vadd.f32 0.0, %v1014
    %1016 = vdwg.mxu0
    %v1017 = vsel %vm311, %v1015, -inf
    %1018 = vmax.xlane.f32.xlu0 %v1017
    %v1019 = vpop.xlane.xlu0 %1018
    %v1020 = vsub.f32 %v1015, %v1019
    %v1021 = vmul.f32 %v1020, 1.442695
    %v1022 = vpow.pop %v1021
    %v1023 = vsel %vm311, %v1022, 0.0
    %1024 = vadd.xlane.f32.xlu0 %v1023
    %v1025 = vpop.xlane.xlu0 %1024
    %v1026 = vrcp.pop %v1025
    %v1027 = vmul.f32 %v1025, %v1026
    %v1028 = vsub.f32 2.0, %v1027
    %v1029 = vmul.f32 %v1026, %v1028
    %v1030 = vmul.f32 %v1022, %v1029
    %1031 = vrot.lane.b32.xlu0 %v919, 56
    %v1032 = vpop.permute.xlu0 %1031
    %v1035 = vsel %vm311, %v1030, 0
    %1037 = vmatpush.msra.mxu0 0.0
    %1038 = vmatpush.msra.mxu0 0.0
    %1039 = vmatpush.msra.mxu0 0.0
    %1040 = vmatpush.msra.mxu0 0.0
    %1041 = vmatpush.msra.mxu0 0.0
    %1042 = vmatpush.msra.mxu0 0.0
    %1043 = vmatpush.msra.mxu0 0.0
    %1044 = vmatpush.msra.mxu0 0.0
    %1045 = vmatpush.msra.mxu0 0.0
    %1046 = vmatpush.msra.mxu0 0.0
    %1047 = vmatpush.msra.mxu0 0.0
    %1048 = vmatpush.msra.mxu0 0.0
    %1049 = vmatpush.msra.mxu0 0.0
    %1050 = vmatpush.msra.mxu0 0.0
    %1051 = vmatpush.msra.mxu0 0.0
    %1052 = vmatpush.msra.mxu0 %v1032
    %1053 = vmatmul.f32.gmra.mxu0 %v1035
    %v1054 = vpop.f32.mrf.mxu0
    %v1055 = vadd.f32 0.0, %v1054
    %1056 = vdwg.mxu0
    %v1058 = vsel %vm311, %v1055, 0
    %1060 = vmatpush.msra.mxu0 0.0
    %1061 = vmatpush.msra.mxu0 0.0
    %1062 = vmatpush.msra.mxu0 0.0
    %1063 = vmatpush.msra.mxu0 0.0
    %1064 = vmatpush.msra.mxu0 0.0
    %1065 = vmatpush.msra.mxu0 0.0
    %1066 = vmatpush.msra.mxu0 0.0
    %1067 = vmatpush.msra.mxu0 0.0
    %1068 = vmatpush.msra.mxu0 0.0
    %1069 = vmatpush.msra.mxu0 0.0
    %1070 = vmatpush.msra.mxu0 0.0
    %1071 = vmatpush.msra.mxu0 0.0
    %1072 = vmatpush.msra.mxu0 0.0
    %1073 = vmatpush.msra.mxu0 0.0
    %1074 = vmatpush.msra.mxu0 0.0
    %1075 = vmatpush.msra.mxu0 %v85
    %1076 = vmatmul.f32.gmra.mxu0 %v1058
    %v1077 = vpop.f32.mrf.mxu0
    %v1078 = vadd.f32 0.0, %v1077
    %1079 = vdwg.mxu0
    %v1081 = vsel %vm311, %v987, 0
    %1083 = vmatpush.msra.mxu0 0.0
    %1084 = vmatpush.msra.mxu0 0.0
    %1085 = vmatpush.msra.mxu0 0.0
    %1086 = vmatpush.msra.mxu0 0.0
    %1087 = vmatpush.msra.mxu0 0.0
    %1088 = vmatpush.msra.mxu0 0.0
    %1089 = vmatpush.msra.mxu0 0.0
    %1090 = vmatpush.msra.mxu0 0.0
    %1091 = vmatpush.msra.mxu0 0.0
    %1092 = vmatpush.msra.mxu0 0.0
    %1093 = vmatpush.msra.mxu0 0.0
    %1094 = vmatpush.msra.mxu0 0.0
    %1095 = vmatpush.msra.mxu0 0.0
    %1096 = vmatpush.msra.mxu0 0.0
    %1097 = vmatpush.msra.mxu0 0.0
    %1098 = vmatpush.msra.mxu0 %v84
    %1099 = vmatmul.f32.gmra.mxu0 %v1081
    %v1100 = vpop.f32.mrf.mxu0
    %v1101 = vadd.f32 %v1078, %v1100
    %1102 = vdwg.mxu0
    %1103 = vrot.lane.b32.xlu0 %v917, 112
    %v1104 = vpop.permute.xlu0 %1103
    %1105 = vrot.lane.b32.xlu0 %v918, 80
    %v1106 = vpop.permute.xlu0 %1105
    %v1107 = vsel %vm311, %v1104, 0
    %v1109 = vsel %vm311, %v1106, 0
    %1111 = vmatpush.xpose.msra.mxu0 0.0
    %1112 = vmatpush.xpose.msra.mxu0 0.0
    %1113 = vmatpush.xpose.msra.mxu0 0.0
    %1114 = vmatpush.xpose.msra.mxu0 0.0
    %1115 = vmatpush.xpose.msra.mxu0 0.0
    %1116 = vmatpush.xpose.msra.mxu0 0.0
    %1117 = vmatpush.xpose.msra.mxu0 0.0
    %1118 = vmatpush.xpose.msra.mxu0 0.0
    %1119 = vmatpush.xpose.msra.mxu0 0.0
    %1120 = vmatpush.xpose.msra.mxu0 0.0
    %1121 = vmatpush.xpose.msra.mxu0 0.0
    %1122 = vmatpush.xpose.msra.mxu0 0.0
    %1123 = vmatpush.xpose.msra.mxu0 0.0
    %1124 = vmatpush.xpose.msra.mxu0 0.0
    %1125 = vmatpush.xpose.msra.mxu0 0.0
    %1126 = vmatpush.xpose.msra.mxu0 %v1109
    %1127 = vmatmul.f32.gmra.mxu0 %v1107
    %v1128 = vpop.f32.mrf.mxu0
    %v1129 = vadd.f32 0.0, %v1128
    %1130 = vdwg.mxu0
    %v1131 = vsel %vm311, %v1129, -inf
    %1132 = vmax.xlane.f32.xlu0 %v1131
    %v1133 = vpop.xlane.xlu0 %1132
    %v1134 = vsub.f32 %v1129, %v1133
    %v1135 = vmul.f32 %v1134, 1.442695
    %v1136 = vpow.pop %v1135
    %v1137 = vsel %vm311, %v1136, 0.0
    %1138 = vadd.xlane.f32.xlu0 %v1137
    %v1139 = vpop.xlane.xlu0 %1138
    %v1140 = vrcp.pop %v1139
    %v1141 = vmul.f32 %v1139, %v1140
    %v1142 = vsub.f32 2.0, %v1141
    %v1143 = vmul.f32 %v1140, %v1142
    %v1144 = vmul.f32 %v1136, %v1143
    %1145 = vrot.lane.b32.xlu0 %v919, 48
    %v1146 = vpop.permute.xlu0 %1145
    %v1149 = vsel %vm311, %v1144, 0
    %1151 = vmatpush.msra.mxu0 0.0
    %1152 = vmatpush.msra.mxu0 0.0
    %1153 = vmatpush.msra.mxu0 0.0
    %1154 = vmatpush.msra.mxu0 0.0
    %1155 = vmatpush.msra.mxu0 0.0
    %1156 = vmatpush.msra.mxu0 0.0
    %1157 = vmatpush.msra.mxu0 0.0
    %1158 = vmatpush.msra.mxu0 0.0
    %1159 = vmatpush.msra.mxu0 0.0
    %1160 = vmatpush.msra.mxu0 0.0
    %1161 = vmatpush.msra.mxu0 0.0
    %1162 = vmatpush.msra.mxu0 0.0
    %1163 = vmatpush.msra.mxu0 0.0
    %1164 = vmatpush.msra.mxu0 0.0
    %1165 = vmatpush.msra.mxu0 0.0
    %1166 = vmatpush.msra.mxu0 %v1146
    %1167 = vmatmul.f32.gmra.mxu0 %v1149
    %v1168 = vpop.f32.mrf.mxu0
    %v1169 = vadd.f32 0.0, %v1168
    %1170 = vdwg.mxu0
    %v1172 = vsel %vm311, %v1169, 0
    %1174 = vmatpush.msra.mxu0 0.0
    %1175 = vmatpush.msra.mxu0 0.0
    %1176 = vmatpush.msra.mxu0 0.0
    %1177 = vmatpush.msra.mxu0 0.0
    %1178 = vmatpush.msra.mxu0 0.0
    %1179 = vmatpush.msra.mxu0 0.0
    %1180 = vmatpush.msra.mxu0 0.0
    %1181 = vmatpush.msra.mxu0 0.0
    %1182 = vmatpush.msra.mxu0 0.0
    %1183 = vmatpush.msra.mxu0 0.0
    %1184 = vmatpush.msra.mxu0 0.0
    %1185 = vmatpush.msra.mxu0 0.0
    %1186 = vmatpush.msra.mxu0 0.0
    %1187 = vmatpush.msra.mxu0 0.0
    %1188 = vmatpush.msra.mxu0 0.0
    %1189 = vmatpush.msra.mxu0 %v86
    %1190 = vmatmul.f32.gmra.mxu0 %v1172
    %v1191 = vpop.f32.mrf.mxu0
    %v1192 = vadd.f32 0.0, %v1191
    %1193 = vdwg.mxu0
    %v1194 = vadd.f32 %v1101, %v1192
    %1195 = vrot.lane.b32.xlu0 %v917, 104
    %v1196 = vpop.permute.xlu0 %1195
    %1197 = vrot.lane.b32.xlu0 %v918, 72
    %v1198 = vpop.permute.xlu0 %1197
    %v1199 = vsel %vm311, %v1196, 0
    %v1201 = vsel %vm311, %v1198, 0
    %1203 = vmatpush.xpose.msra.mxu0 0.0
    %1204 = vmatpush.xpose.msra.mxu0 0.0
    %1205 = vmatpush.xpose.msra.mxu0 0.0
    %1206 = vmatpush.xpose.msra.mxu0 0.0
    %1207 = vmatpush.xpose.msra.mxu0 0.0
    %1208 = vmatpush.xpose.msra.mxu0 0.0
    %1209 = vmatpush.xpose.msra.mxu0 0.0
    %1210 = vmatpush.xpose.msra.mxu0 0.0
    %1211 = vmatpush.xpose.msra.mxu0 0.0
    %1212 = vmatpush.xpose.msra.mxu0 0.0
    %1213 = vmatpush.xpose.msra.mxu0 0.0
    %1214 = vmatpush.xpose.msra.mxu0 0.0
    %1215 = vmatpush.xpose.msra.mxu0 0.0
    %1216 = vmatpush.xpose.msra.mxu0 0.0
    %1217 = vmatpush.xpose.msra.mxu0 0.0
    %1218 = vmatpush.xpose.msra.mxu0 %v1201
    %1219 = vmatmul.f32.gmra.mxu0 %v1199
    %v1220 = vpop.f32.mrf.mxu0
    %v1221 = vadd.f32 0.0, %v1220
    %1222 = vdwg.mxu0
    %v1223 = vsel %vm311, %v1221, -inf
    %1224 = vmax.xlane.f32.xlu0 %v1223
    %v1225 = vpop.xlane.xlu0 %1224
    %v1226 = vsub.f32 %v1221, %v1225
    %v1227 = vmul.f32 %v1226, 1.442695
    %v1228 = vpow.pop %v1227
    %v1229 = vsel %vm311, %v1228, 0.0
    %1230 = vadd.xlane.f32.xlu0 %v1229
    %v1231 = vpop.xlane.xlu0 %1230
    %v1232 = vrcp.pop %v1231
    %v1233 = vmul.f32 %v1231, %v1232
    %v1234 = vsub.f32 2.0, %v1233
    %v1235 = vmul.f32 %v1232, %v1234
    %v1236 = vmul.f32 %v1228, %v1235
    %1237 = vrot.lane.b32.xlu0 %v919, 40
    %v1238 = vpop.permute.xlu0 %1237
    %v1241 = vsel %vm311, %v1236, 0
    %1243 = vmatpush.msra.mxu0 0.0
    %1244 = vmatpush.msra.mxu0 0.0
    %1245 = vmatpush.msra.mxu0 0.0
    %1246 = vmatpush.msra.mxu0 0.0
    %1247 = vmatpush.msra.mxu0 0.0
    %1248 = vmatpush.msra.mxu0 0.0
    %1249 = vmatpush.msra.mxu0 0.0
    %1250 = vmatpush.msra.mxu0 0.0
    %1251 = vmatpush.msra.mxu0 0.0
    %1252 = vmatpush.msra.mxu0 0.0
    %1253 = vmatpush.msra.mxu0 0.0
    %1254 = vmatpush.msra.mxu0 0.0
    %1255 = vmatpush.msra.mxu0 0.0
    %1256 = vmatpush.msra.mxu0 0.0
    %1257 = vmatpush.msra.mxu0 0.0
    %1258 = vmatpush.msra.mxu0 %v1238
    %1259 = vmatmul.f32.gmra.mxu0 %v1241
    %v1260 = vpop.f32.mrf.mxu0
    %v1261 = vadd.f32 0.0, %v1260
    %1262 = vdwg.mxu0
    %v1264 = vsel %vm311, %v1261, 0
    %1266 = vmatpush.msra.mxu0 0.0
    %1267 = vmatpush.msra.mxu0 0.0
    %1268 = vmatpush.msra.mxu0 0.0
    %1269 = vmatpush.msra.mxu0 0.0
    %1270 = vmatpush.msra.mxu0 0.0
    %1271 = vmatpush.msra.mxu0 0.0
    %1272 = vmatpush.msra.mxu0 0.0
    %1273 = vmatpush.msra.mxu0 0.0
    %1274 = vmatpush.msra.mxu0 0.0
    %1275 = vmatpush.msra.mxu0 0.0
    %1276 = vmatpush.msra.mxu0 0.0
    %1277 = vmatpush.msra.mxu0 0.0
    %1278 = vmatpush.msra.mxu0 0.0
    %1279 = vmatpush.msra.mxu0 0.0
    %1280 = vmatpush.msra.mxu0 0.0
    %1281 = vmatpush.msra.mxu0 %v87
    %1282 = vmatmul.f32.gmra.mxu0 %v1264
    %v1283 = vpop.f32.mrf.mxu0
    %v1284 = vadd.f32 0.0, %v1283
    %1285 = vdwg.mxu0
    %v1286 = vadd.f32 %v1194, %v1284
    %v1287 = vadd.f32 %v1286, %v676
    %v1288 = vsel %vm126, %v1287, 0.0
    %1289 = vadd.xlane.f32.xlu0 %v1288
    %v1290 = vpop.xlane.xlu0 %1289
    %v1291 = vmul.f32 %v1290, %v136
    %v1292 = vsub.f32 %v1287, %v1291
    %v1293 = vmul.f32 %v1292, %v1292
    %v1294 = vsel %vm126, %v1293, 0.0
    %1295 = vadd.xlane.f32.xlu0 %v1294
    %v1296 = vpop.xlane.xlu0 %1295
    %v1297 = vmul.f32 %v1296, %v136
    %v1298 = vadd.f32 %v1297, 1e-05
    %v1299 = vrsqrt.pop %v1298
    %v1300 = vmul.f32 %v1299, %v1298
    %v1301 = vmul.f32 %v1300, %v1299
    %v1302 = vmul.f32 0.5, %v1301
    %v1303 = vsub.f32 1.5, %v1302
    %v1304 = vmul.f32 %v1299, %v1303
    %vm1305 = vweird.f32 %v1298
    %vm1306 = vweird.f32 %v1299
    %vm1307 = vmor %vm1305, %vm1306
    %v1308 = vsel %vm1307, %v1299, %v1304
    %v1309 = vmul.f32 %v1292, %v1308
    %v1310 = vmul.f32 %v1309, %v700
    %v1311 = vadd.f32 %v1310, %v702
    %v1313 = vrot.slane %v1311, 1
    %v1314 = vrot.slane %v1311, 2
    %v1315 = vrot.slane %v1311, 3
    %v1316 = vrot.slane %v1311, 4
    %v1317 = vrot.slane %v1311, 5
    %v1318 = vrot.slane %v1311, 6
    %v1319 = vrot.slane %v1311, 7
    %1327 = vst.msk [vmem:[#allocation10 + $0x1] sm:$0x1] %vm719, %v1311
    %1328 = vst.msk [vmem:[#allocation10 + $0x3] sm:$0x1] %vm719, %v1313
    %1329 = vst.msk [vmem:[#allocation10 + $0x5] sm:$0x1] %vm719, %v1314
    %1330 = vst.msk [vmem:[#allocation10 + $0x7] sm:$0x1] %vm719, %v1315
    %1331 = vst.msk [vmem:[#allocation10 + $0x9] sm:$0x1] %vm719, %v1316
    %1332 = vst.msk [vmem:[#allocation10 + $0xb] sm:$0x1] %vm719, %v1317
    %1333 = vst.msk [vmem:[#allocation10 + $0xd] sm:$0x1] %vm719, %v1318
    %1334 = vst.msk [vmem:[#allocation10 + $0xf] sm:$0x1] %vm719, %v1319
    // Predicated region
    $region34: #{transformer_self_forward.1} parent=1 // pred_check
      _
    $region35: #{transformer_self_forward.1} parent=1 // pred_check_branch
      %1336 = sbr.rel (0) target = $region37
    $region36: #{transformer_self_forward.1} parent=1 // pred_region
      %1338 = vsyncadd [#allocation4], 0
      %s1339 = sshll.u32 [#allocation10], 4
      %s1340 = int_to_ptr.vmem [resolvable:$true] %s1339
      %s1341 = sshll.u32 %s4, 4
      %s1342 = int_to_ptr.hbm [resolvable:$true] %s1341
      %1347 = dma.vmem_to_hbm [thread:$0]  %s1340, 256, %s1342, [#allocation4], 32, 32, 2
    $region37: #{transformer_self_forward.1} parent=1 // pred_fallthru
      _
    // Predicated region
    $region38: #{transformer_self_forward.1} parent=1 // pred_check
      _
    $region39: #{transformer_self_forward.1} parent=1 // pred_check_branch
      %1349 = sbr.rel (0) target = $region41
    $region40: #{transformer_self_forward.1} parent=1 // pred_region
      %1351 = dma.done [#allocation4], 256
    $region41: #{transformer_self_forward.1} parent=1 // pred_fallthru
      _
    %1352 = vsyncpa [#allocation3], 1
    %1353 = vsyncpa [#allocation6], 1
    %1354 = vsyncpa [#allocation9], 1
    %1355 = vsyncpa [#allocation4], 1

</llo_original>
